<compile_context>
chip_gen: v6e
topology: v6e:2x2x1
jax: 0.10.0
libtpu: 0.0.40
codegen_flags: <defaults>
</compile_context>

<pallas_src>
import math
import numpy as np

import jax
import jax.numpy as jnp
from jax import lax
from jax.experimental import pallas as pl
from jax.experimental.pallas import tpu as pltpu


# ----------------------------------------------------------------------------
# helpers
# ----------------------------------------------------------------------------
def _round_up(x, m):
    return (x + m - 1) // m * m


def _pick_rows(hwp, max_rows=2048):
    """Largest multiple of 128 that divides hwp (hwp is a multiple of 128)."""
    best = 128
    d = 128
    while d <= min(hwp, max_rows):
        if hwp % d == 0:
            best = d
        d += 128
    return best


# ----------------------------------------------------------------------------
# Pass 1: stats only — one MXU matmul per block, emit (2, Cp) partials
# ----------------------------------------------------------------------------
def _conv_stats_kernel(p_ref, w_ref, stats_ref):
    # p_ref    : (1, ROWS, Kp)  bf16 lane-dense im2col patch block
    # w_ref    : (Kp, Cp)       bf16 im2col weight (resident)
    # stats_ref: (1, 1, 2, Cp)  f32 [sum, sumsq] partial for this block
    patch = p_ref[0]                                           # (ROWS, Kp)
    acc = jnp.dot(patch, w_ref[...],
                  preferred_element_type=jnp.float32)          # (ROWS, Cp) f32
    ssum = jnp.sum(acc, axis=0, keepdims=True)                 # (1, Cp)
    ssq = jnp.sum(acc * acc, axis=0, keepdims=True)            # (1, Cp)
    stats_ref[0, 0] = jnp.concatenate([ssum, ssq], axis=0)     # single store


# ----------------------------------------------------------------------------
# Pass 2: recompute conv, fuse BN scale/shift + SiLU, store NCHW directly
# ----------------------------------------------------------------------------
def _conv_bn_silu_kernel(p_ref, w_ref, scale_ref, shift_ref, o_ref):
    # p_ref    : (1, ROWS, Kp)   bf16
    # w_ref    : (Kp, Cp)        bf16 (resident)
    # scale_ref: (1, Cp)         f32  (resident)
    # shift_ref: (1, Cp)         f32  (resident)
    # o_ref    : (1, Cout, ROWS) f32  — lane-dense NCHW output block
    patch = p_ref[0]
    acc = jnp.dot(patch, w_ref[...],
                  preferred_element_type=jnp.float32)          # (ROWS, Cp) f32
    z = acc * scale_ref[...] + shift_ref[...]
    y = z * jax.nn.sigmoid(z)                                  # SiLU
    yt = jnp.transpose(y)                                      # (Cp, ROWS), XLU
    o_ref[0] = yt[0:o_ref.shape[1], :].astype(o_ref.dtype)     # strip C padding


# ----------------------------------------------------------------------------
# Host wrapper: conv2d -> BatchNorm2d (training stats) -> SiLU
# ----------------------------------------------------------------------------
def orepa_forward(x_nchw, weight_oihw, gamma, beta, *, padding=1, eps=1e-5,
                  max_rows=2048):
    N, Cin, H, W = x_nchw.shape
    Cout, _, KH, KW = weight_oihw.shape

    Ho = H + 2 * padding - KH + 1
    Wo = W + 2 * padding - KW + 1
    HW = Ho * Wo
    kkc = KH * KW * Cin

    Cp = _round_up(Cout, 128)          # lane-dense output-channel padding
    Kp = _round_up(kkc, 128)           # lane-dense contraction padding
    HWp = _round_up(HW, 128)           # 128-aligned spatial rows
    ROWS = _pick_rows(HWp, max_rows)   # MXU M-tile, multiple of 128
    nblk = HWp // ROWS
    mxu_dtype = jnp.bfloat16

    # --- host-side im2col: single fused XLA producer, bf16, lane-dense ------
    x_nhwc = jnp.transpose(x_nchw, (0, 2, 3, 1))
    x_pad = jnp.pad(
        x_nhwc, ((0, 0), (padding, padding), (padding, padding), (0, 0)))
    taps = [x_pad[:, kh:kh + Ho, kw:kw + Wo, :]
            for kh in range(KH) for kw in range(KW)]
    patches = jnp.concatenate(taps, axis=-1).reshape(N, HW, kkc)
    patches = jnp.pad(
        patches, ((0, 0), (0, HWp - HW), (0, Kp - kkc))).astype(mxu_dtype)

    # im2col weight, (Kp, Cp) bf16 — row order (kh, kw, cin) matches patches.
    w_col = jnp.transpose(weight_oihw, (2, 3, 1, 0)).reshape(kkc, Cout)
    w_col = jnp.pad(w_col, ((0, Kp - kkc), (0, Cp - Cout))).astype(mxu_dtype)

    cparams = pltpu.CompilerParams(
        dimension_semantics=("parallel", "parallel"),
        vmem_limit_bytes=48 * 1024 * 1024,   # safe on v7x (64 MiB physical)
    )

    # --- pass 1: per-block channel [sum, sumsq] partials ---------------------
    stats = pl.pallas_call(
        _conv_stats_kernel,
        grid=(N, nblk),
        out_shape=jax.ShapeDtypeStruct((N, nblk, 2, Cp), jnp.float32),
        in_specs=[
            pl.BlockSpec((1, ROWS, Kp), lambda n, r: (n, r, 0)),
            pl.BlockSpec((Kp, Cp), lambda n, r: (0, 0)),
        ],
        out_specs=pl.BlockSpec((1, 1, 2, Cp), lambda n, r: (n, r, 0, 0)),
        compiler_params=cparams,
    )(patches, w_col)

    # --- BN finalize on the host: tiny per-channel math ----------------------
    # TODO(synk): running_mean / running_var momentum buffers are not updated.
    count = N * HW                                   # real (unpadded) count
    s = jnp.sum(stats, axis=(0, 1))                  # (2, Cp)
    mean = s[0] / count
    var = jnp.maximum(s[1] / count - mean * mean, 0.0)   # biased var (train BN)
    gamma_p = jnp.pad(gamma.astype(jnp.float32), (0, Cp - Cout))
    beta_p = jnp.pad(beta.astype(jnp.float32), (0, Cp - Cout))
    scale_v = gamma_p * lax.rsqrt(var + eps)
    shift_v = beta_p - mean * scale_v

    # --- pass 2: conv (recomputed) + BN + SiLU, NCHW lane-dense output -------
    out_p = pl.pallas_call(
        _conv_bn_silu_kernel,
        grid=(N, nblk),
        out_shape=jax.ShapeDtypeStruct((N, Cout, HWp), jnp.float32),
        in_specs=[
            pl.BlockSpec((1, ROWS, Kp), lambda n, r: (n, r, 0)),
            pl.BlockSpec((Kp, Cp), lambda n, r: (0, 0)),
            pl.BlockSpec((1, Cp), lambda n, r: (0, 0)),
            pl.BlockSpec((1, Cp), lambda n, r: (0, 0)),
        ],
        out_specs=pl.BlockSpec((1, Cout, ROWS), lambda n, r: (n, 0, r)),
        compiler_params=cparams,
    )(patches, w_col, scale_v.reshape(1, Cp), shift_v.reshape(1, Cp))

    # Drop spatial padding (no-op when HW is already 128-aligned); pure
    # metadata reshape back to (N, Cout, Ho, Wo) — no padded-tensor transpose.
    return out_p[:, :, :HW].reshape(N, Cout, Ho, Wo)


# ----------------------------------------------------------------------------
# Deterministic parameter construction (mirrors OREPA.__init__, groups=1,
# kernel_size=3, internal_channels_1x1_3x3 = in_channels, init_hyper_* = 1.0)
# ----------------------------------------------------------------------------
def _kaiming_uniform(key, shape, a=0.0):
    fan_in = int(np.prod(shape[1:]))
    gain = math.sqrt(2.0 / (1.0 + a * a))
    bound = gain * math.sqrt(3.0 / fan_in)
    return jax.random.uniform(key, shape, jnp.float32, -bound, bound)


def init_orepa_params(key, in_ch, out_ch, k=3, expand_ratio=8):
    keys = jax.random.split(key, 8)
    p = {}
    p["w_origin"] = _kaiming_uniform(keys[0], (out_ch, in_ch, k, k))
    p["w_avg_conv"] = _kaiming_uniform(keys[1], (out_ch, in_ch, 1, 1))
    p["w_pfir_conv"] = _kaiming_uniform(keys[2], (out_ch, in_ch, 1, 1))
    p["w_1x1"] = _kaiming_uniform(keys[3], (out_ch, in_ch, 1, 1))
    # internal_channels_1x1_3x3 == in_channels -> idconv1 zeros + identity buf
    p["idconv1"] = jnp.zeros((in_ch, in_ch, 1, 1), jnp.float32)
    id_np = np.zeros((in_ch, in_ch, 1, 1), np.float32)
    for i in range(in_ch):
        id_np[i, i % in_ch, 0, 0] = 1.0
    p["id_tensor"] = jnp.asarray(id_np)
    p["conv2"] = _kaiming_uniform(keys[4], (out_ch, in_ch, k, k))
    p["gconv_dw"] = _kaiming_uniform(keys[5], (in_ch * expand_ratio, 1, k, k))
    p["gconv_pw"] = _kaiming_uniform(keys[6], (out_ch, in_ch * expand_ratio, 1, 1))

    consts = np.array([0.25, 0.25, 0.0, 0.5, 1.0, 0.5], np.float32)
    p["vector"] = jnp.asarray(np.repeat(consts[:, None], out_ch, axis=1))

    prior = np.zeros((out_ch, k, k), np.float32)
    half_fg = out_ch / 2
    for i in range(out_ch):
        for h in range(3):
            for w in range(3):
                if i < half_fg:
                    prior[i, h, w] = math.cos(math.pi * (h + 0.5) * (i + 1) / 3)
                else:
                    prior[i, h, w] = math.cos(
                        math.pi * (w + 0.5) * (i + 1 - half_fg) / 3)
    p["prior"] = jnp.asarray(prior)
    p["avg_avg"] = jnp.full((k, k), 1.0 / (k * k), jnp.float32)

    p["bn_gamma"] = jnp.ones((out_ch,), jnp.float32)
    p["bn_beta"] = jnp.zeros((out_ch,), jnp.float32)
    return p


def weight_gen(p, in_ch, out_ch, k=3, expand_ratio=8):
    """Plain-JAX replica of OREPA.weight_gen (groups == 1 path)."""
    v = p["vector"]  # (6, O)

    w_origin = p["w_origin"] * v[0][:, None, None, None]

    avg2d = p["w_avg_conv"][:, :, 0, 0]
    w_avg = (avg2d[:, :, None, None] * p["avg_avg"][None, None, :, :]) \
            * v[1][:, None, None, None]

    pfir2d = p["w_pfir_conv"][:, :, 0, 0]
    w_pfir = (pfir2d[:, :, None, None] * p["prior"][:, None, :, :]) \
             * v[2][:, None, None, None]

    conv1 = (p["idconv1"] + p["id_tensor"])[:, :, 0, 0]
    w_1x1_kxk = jnp.einsum("ti,othw->oihw", conv1, p["conv2"]) \
                * v[3][:, None, None, None]

    pad = (k - 1) // 2
    w_1x1 = jnp.pad(p["w_1x1"], ((0, 0), (0, 0), (pad, pad), (pad, pad))) \
            * v[4][:, None, None, None]

    t = in_ch * expand_ratio
    tg = t // in_ch
    dw = p["gconv_dw"].reshape(1, in_ch, tg, 1, k, k)
    pw = p["gconv_pw"][:, :, 0, 0].reshape(out_ch, 1, in_ch, tg)
    w_gconv = jnp.einsum("cgtihw,ocgt->cogihw", dw, pw) \
                 .reshape(out_ch, in_ch, k, k) * v[5][:, None, None, None]

    return w_origin + w_avg + w_1x1 + w_1x1_kxk + w_pfir + w_gconv


# ----------------------------------------------------------------------------
# Pure-JAX reference (sanity check)
# ----------------------------------------------------------------------------
def reference_forward(x, weight, gamma, beta, padding=1):
    y = lax.conv_general_dilated(
        x, weight, window_strides=(1, 1),
        padding=[(padding, padding), (padding, padding)],
        dimension_numbers=("NCHW", "OIHW", "NCHW"))
    mean = jnp.mean(y, axis=(0, 2, 3), keepdims=True)
    var = jnp.mean((y - mean) ** 2, axis=(0, 2, 3), keepdims=True)
    yn = (y - mean) * lax.rsqrt(var + 1e-5)
    yn = yn * gamma.reshape(1, -1, 1, 1) + beta.reshape(1, -1, 1, 1)
    return yn * jax.nn.sigmoid(yn)


if __name__ == "__main__":
    in_channels, out_channels = 4, 8
    N, H, W = 2, 16, 16
    k = 3
    padding = 1  # autopad(3, None, 1)

    key = jax.random.PRNGKey(0)
    k_x, k_p = jax.random.split(key)
    x = jax.random.normal(k_x, (N, in_channels, H, W), jnp.float32)

    params = init_orepa_params(k_p, in_channels, out_channels, k=k)
    weight = weight_gen(params, in_channels, out_channels, k=k)  # (O, I, 3, 3)

    fwd = jax.jit(orepa_forward, static_argnames=("padding", "max_rows"))
    out = jax.block_until_ready(
        fwd(x, weight, params["bn_gamma"], params["bn_beta"], padding=padding))

    ref = jax.block_until_ready(
        reference_forward(x, weight, params["bn_gamma"], params["bn_beta"],
                          padding=padding))

    assert out.shape == (N, out_channels, H, W)
    # bf16 MXU operands (f32 accumulation) -> bf16-level tolerance vs f32 ref.
    max_err = float(np.max(np.abs(np.asarray(out) - np.asarray(ref))))
    assert np.allclose(np.asarray(out), np.asarray(ref), rtol=5e-2, atol=5e-2), \
        f"Pallas kernel mismatch vs reference (max abs err = {max_err})"

    print("KERNEL_OK")
</pallas_src>

<mosaic_0001>
module attributes {stable_mosaic.version = 11 : i64} {
  func.func @_conv_stats_kernel(%arg0: i32, %arg1: i32, %arg2: memref<1x256x128xbf16, #tpu.memory_space<vmem>>, %arg3: memref<128x128xbf16, #tpu.memory_space<vmem>>, %arg4: memref<1x1x2x128xf32, #tpu.memory_space<vmem>>) attributes {dimension_semantics = [#tpu.dimension_semantics<parallel>, #tpu.dimension_semantics<parallel>], iteration_bounds = array<i64: 2, 1>, scalar_prefetch = 0 : i64, scratch_operands = 0 : i64, tpu.core_type = #tpu.core_type<tc>, window_params = [{transform_indices = @transform_0, window_bounds = array<i64: 1, 256, 128>}, {pipeline_mode = #tpu.pipeline_mode<synchronous>, transform_indices = @transform_1, window_bounds = array<i64: 128, 128>}, {transform_indices = @transform_2, window_bounds = array<i64: 1, 1, 2, 128>}]} {
    %c0 = arith.constant 0 : index
    %c0_0 = arith.constant 0 : index
    %c0_1 = arith.constant 0 : index
    %0 = vector.load %arg2[%c0, %c0_0, %c0_1] : memref<1x256x128xbf16, #tpu.memory_space<vmem>>, vector<1x256x128xbf16>
    %1 = vector.shape_cast %0 : vector<1x256x128xbf16> to vector<256x128xbf16>
    %c0_2 = arith.constant 0 : index
    %c0_3 = arith.constant 0 : index
    %2 = vector.load %arg3[%c0_2, %c0_3] : memref<128x128xbf16, #tpu.memory_space<vmem>>, vector<128x128xbf16>
    %cst = arith.constant dense<0.000000e+00> : vector<256x128xf32>
    %3 = tpu.matmul %1, %2, %cst {dimension_numbers = #tpu.dot_dimension_numbers<[1], [0], [0], [1], [0, 0, 1, 1], [], []>} : vector<256x128xbf16>, vector<128x128xbf16>, vector<256x128xf32> -> vector<256x128xf32>
    %cst_4 = arith.constant dense<0.000000e+00> : vector<128xf32>
    %4 = vector.multi_reduction <add>, %3, %cst_4 [0] : vector<256x128xf32> to vector<128xf32>
    %5 = vector.shape_cast %4 : vector<128xf32> to vector<1x128xf32>
    %6 = arith.mulf %3, %3 : vector<256x128xf32>
    %cst_5 = arith.constant dense<0.000000e+00> : vector<128xf32>
    %7 = vector.multi_reduction <add>, %6, %cst_5 [0] : vector<256x128xf32> to vector<128xf32>
    %8 = vector.shape_cast %7 : vector<128xf32> to vector<1x128xf32>
    %9 = tpu.concatenate %5, %8 in 0 : vector<1x128xf32>, vector<1x128xf32> -> vector<2x128xf32>
    %c0_6 = arith.constant 0 : index
    %c0_7 = arith.constant 0 : index
    %c0_8 = arith.constant 0 : index
    %c0_9 = arith.constant 0 : index
    %10 = vector.load %arg4[%c0_6, %c0_7, %c0_8, %c0_9] : memref<1x1x2x128xf32, #tpu.memory_space<vmem>>, vector<1x1x2x128xf32>
    %11 = vector.shape_cast %10 : vector<1x1x2x128xf32> to vector<2x128xf32>
    %12 = vector.shape_cast %9 : vector<2x128xf32> to vector<1x1x2x128xf32>
    tpu.vector_store %arg4[%c0_6, %c0_7, %c0_8, %c0_9], %12 {strides = array<i32>} : memref<1x1x2x128xf32, #tpu.memory_space<vmem>>, vector<1x1x2x128xf32>,
    return
  }
  func.func @transform_0(%arg0: i32, %arg1: i32) -> (i32, i32, i32) {
    %c0_i32 = arith.constant 0 : i32
    %c0_i32_0 = arith.constant 0 : i32
    return %arg0, %arg1, %c0_i32 : i32, i32, i32
  }
  func.func @transform_1(%arg0: i32, %arg1: i32) -> (i32, i32) {
    %c0_i32 = arith.constant 0 : i32
    %c0_i32_0 = arith.constant 0 : i32
    %c0_i32_1 = arith.constant 0 : i32
    return %c0_i32, %c0_i32_0 : i32, i32
  }
  func.func @transform_2(%arg0: i32, %arg1: i32) -> (i32, i32, i32, i32) {
    %c0_i32 = arith.constant 0 : i32
    %c0_i32_0 = arith.constant 0 : i32
    %c0_i32_1 = arith.constant 0 : i32
    return %arg0, %arg1, %c0_i32, %c0_i32_0 : i32, i32, i32, i32
  }
}

module attributes {stable_mosaic.version = 11 : i64} {
  func.func @_conv_bn_silu_kernel(%arg0: i32, %arg1: i32, %arg2: memref<1x256x128xbf16, #tpu.memory_space<vmem>>, %arg3: memref<128x128xbf16, #tpu.memory_space<vmem>>, %arg4: memref<1x128xf32, #tpu.memory_space<vmem>>, %arg5: memref<1x128xf32, #tpu.memory_space<vmem>>, %arg6: memref<1x8x256xf32, #tpu.memory_space<vmem>>) attributes {dimension_semantics = [#tpu.dimension_semantics<parallel>, #tpu.dimension_semantics<parallel>], iteration_bounds = array<i64: 2, 1>, scalar_prefetch = 0 : i64, scratch_operands = 0 : i64, tpu.core_type = #tpu.core_type<tc>, window_params = [{transform_indices = @transform_0, window_bounds = array<i64: 1, 256, 128>}, {pipeline_mode = #tpu.pipeline_mode<synchronous>, transform_indices = @transform_1, window_bounds = array<i64: 128, 128>}, {pipeline_mode = #tpu.pipeline_mode<synchronous>, transform_indices = @transform_2, window_bounds = array<i64: 1, 128>}, {pipeline_mode = #tpu.pipeline_mode<synchronous>, transform_indices = @transform_3, window_bounds = array<i64: 1, 128>}, {transform_indices = @transform_4, window_bounds = array<i64: 1, 8, 256>}]} {
    %c0 = arith.constant 0 : index
    %c0_0 = arith.constant 0 : index
    %c0_1 = arith.constant 0 : index
    %0 = vector.load %arg2[%c0, %c0_0, %c0_1] : memref<1x256x128xbf16, #tpu.memory_space<vmem>>, vector<1x256x128xbf16>
    %1 = vector.shape_cast %0 : vector<1x256x128xbf16> to vector<256x128xbf16>
    %c0_2 = arith.constant 0 : index
    %c0_3 = arith.constant 0 : index
    %2 = vector.load %arg3[%c0_2, %c0_3] : memref<128x128xbf16, #tpu.memory_space<vmem>>, vector<128x128xbf16>
    %cst = arith.constant dense<0.000000e+00> : vector<256x128xf32>
    %3 = tpu.matmul %1, %2, %cst {dimension_numbers = #tpu.dot_dimension_numbers<[1], [0], [0], [1], [0, 0, 1, 1], [], []>} : vector<256x128xbf16>, vector<128x128xbf16>, vector<256x128xf32> -> vector<256x128xf32>
    %c0_4 = arith.constant 0 : index
    %c0_5 = arith.constant 0 : index
    %4 = vector.load %arg4[%c0_4, %c0_5] : memref<1x128xf32, #tpu.memory_space<vmem>>, vector<1x128xf32>
    %5 = vector.broadcast %4 : vector<1x128xf32> to vector<256x128xf32>
    %6 = arith.mulf %3, %5 : vector<256x128xf32>
    %c0_6 = arith.constant 0 : index
    %c0_7 = arith.constant 0 : index
    %7 = vector.load %arg5[%c0_6, %c0_7] : memref<1x128xf32, #tpu.memory_space<vmem>>, vector<1x128xf32>
    %8 = vector.broadcast %7 : vector<1x128xf32> to vector<256x128xf32>
    %9 = arith.addf %6, %8 : vector<256x128xf32>
    %10 = arith.negf %9 : vector<256x128xf32>
    %11 = math.exp %10 : vector<256x128xf32>
    %cst_8 = arith.constant 1.000000e+00 : f32
    %12 = vector.broadcast %cst_8 : f32 to vector<256x128xf32>
    %13 = arith.addf %12, %11 : vector<256x128xf32>
    %14 = arith.divf %12, %13 : vector<256x128xf32>
    %15 = arith.mulf %9, %14 : vector<256x128xf32>
    %16 = tpu.transpose %15, [1, 0] : vector<256x128xf32> -> vector<128x256xf32>
    %17 = vector.extract_strided_slice %16 {offsets = [0, 0], sizes = [8, 256], strides = [1, 1]} : vector<128x256xf32> to vector<8x256xf32>
    %c0_9 = arith.constant 0 : index
    %c0_10 = arith.constant 0 : index
    %c0_11 = arith.constant 0 : index
    %18 = vector.load %arg6[%c0_9, %c0_10, %c0_11] : memref<1x8x256xf32, #tpu.memory_space<vmem>>, vector<1x8x256xf32>
    %19 = vector.shape_cast %18 : vector<1x8x256xf32> to vector<8x256xf32>
    %20 = vector.shape_cast %17 : vector<8x256xf32> to vector<1x8x256xf32>
    tpu.vector_store %arg6[%c0_9, %c0_10, %c0_11], %20 {strides = array<i32>} : memref<1x8x256xf32, #tpu.memory_space<vmem>>, vector<1x8x256xf32>,
    return
  }
  func.func @transform_0(%arg0: i32, %arg1: i32) -> (i32, i32, i32) {
    %c0_i32 = arith.constant 0 : i32
    %c0_i32_0 = arith.constant 0 : i32
    return %arg0, %arg1, %c0_i32 : i32, i32, i32
  }
  func.func @transform_1(%arg0: i32, %arg1: i32) -> (i32, i32) {
    %c0_i32 = arith.constant 0 : i32
    %c0_i32_0 = arith.constant 0 : i32
    %c0_i32_1 = arith.constant 0 : i32
    return %c0_i32, %c0_i32_0 : i32, i32
  }
  func.func @transform_2(%arg0: i32, %arg1: i32) -> (i32, i32) {
    %c0_i32 = arith.constant 0 : i32
    %c0_i32_0 = arith.constant 0 : i32
    %c0_i32_1 = arith.constant 0 : i32
    return %c0_i32, %c0_i32_0 : i32, i32
  }
  func.func @transform_3(%arg0: i32, %arg1: i32) -> (i32, i32) {
    %c0_i32 = arith.constant 0 : i32
    %c0_i32_0 = arith.constant 0 : i32
    %c0_i32_1 = arith.constant 0 : i32
    return %c0_i32, %c0_i32_0 : i32, i32
  }
  func.func @transform_4(%arg0: i32, %arg1: i32) -> (i32, i32, i32) {
    %c0_i32 = arith.constant 0 : i32
    %c0_i32_0 = arith.constant 0 : i32
    return %arg0, %c0_i32, %arg1 : i32, i32, i32
  }
}

</mosaic_0001>

<llo_original>
// kernel: orepa_forward.2
$region0: #{orepa_forward.2}
  #allocation0 [shape = 'u32[]', space=smem, size = 0x4, offset = 0x4, fixed_abs, tag = 'smem constant byte address 0x4 - core index']
  #allocation1 [shape = 'u32[144,128]{1,0:T(1,128)}', space=vmem, size = 0x12000, scoped, tag = 'internal scratch']
  %s0 = inlined_call_operand.vmem [shape: bf16[2,256,128], index: 0, kind: input, shape index: {}]
  %s1 = inlined_call_operand.vmem [shape: bf16[128,128], index: 1, kind: input, shape index: {}]
  %s2 = inlined_call_operand.vmem [shape: f32[2,1,2,128], index: 2, kind: output, shape index: {}]
  %s3 = sld [smem:[#allocation0]]
  $region41: #{orepa_forward.2} parent=0
    _
  %s5 = ssub.s32 1, %s3
  %s6 = scalar_select 0, %s5, %s3
  loop: start=0, step=1, limit=4
  $region2: #{orepa_forward.2} parent=0 // loop_pre_header
    _
  $region3: #{orepa_forward.2} parent=0 // loop_header
    %s8 = sphi 0, %s12
    %p9 = scmp.ge.s32.totalorder %s8, 4
    %s15 = sphi 0, %s27
    %s16 = sphi 0, %s23
    %s17 = sphi 0, %s15
    %s18 = sphi 0, %s16
    %s19 = sphi 0, %s17
    %s20 = sphi 0, %s18
    %s32 = sphi 0, %s34
    %s35 = sphi 0, %s32
    %s36 = sphi 0, %s35
    %s52 = sphi 0, %s36
    %s56 = sphi 0, %s56
    %s58 = sphi 0, %s56
    %s59 = sphi 0, %s58
    %s73 = sphi 0, %s59
    %s81 = sphi 0, %s83
    %s84 = sphi 0, %s81
    %s85 = sphi 0, %s84
    %s101 = sphi 0, %s85
  $region4: #{orepa_forward.2} parent=0 // loop_header_branch
    %11 = sbr.rel (%p9) target = $region8
  $region5: #{orepa_forward.2} parent=0 // loop_body
    %s13 = ssub.s32 %s8, 1
    %s14 = ssub.s32 %s8, 2
    %s21 = sadd.s32 1, %s16
    %p22 = scmp.ge.s32.totalorder %s21, 1
    %s23 = scalar_select %p22, 0, %s21
    %s24 = sadd.s32 1, %s15
    %s25 = scalar_select %p22, %s24, %s15
    %p26 = scmp.ge.s32.totalorder %s25, 2
    %s27 = scalar_select %p26, 0, %s25
    %s28 = ssub.s32 %s15, %s27
    %s29 = ssub.s32 %s16, %s23
    %s30 = sor.u32 %s28, %s29
    %p31 = scmp.eq.s32.totalorder %s30, 0
    %s33 = sadd.s32 %s32, 1
    %s34 = scalar_select %p31, %s32, %s33
    %p37 = pneg %p31
    %p38 = scmp.eq.s32.totalorder %s8, 1
    %p39 = por %p37, %p38
    %p40 = scmp.ne.s32.totalorder %s32, %s35
    %p41 = scmp.eq.s32.totalorder %s8, 0
    %p42 = por %p40, %p41
    %p43 = scmp.ne.s32.totalorder %s32, %s35
    %p44 = scmp.eq.s32.totalorder %s13, 1
    %p45 = por %p43, %p44
    %p46 = scmp.ne.s32.totalorder %s35, %s36
    %p47 = scmp.eq.s32.totalorder %s13, 0
    %p48 = por %p46, %p47
    %p49 = scmp.ne.s32.totalorder %s35, %s36
    %p50 = scmp.eq.s32.totalorder %s14, 1
    %p51 = por %p49, %p50
    %p53 = scmp.ne.s32.totalorder %s36, %s52
    %p54 = scmp.eq.s32.totalorder %s14, 0
    %p55 = por %p53, %p54
    %s57 = sadd.s32 %s56, 1
    %p60 = scmp.eq.s32.totalorder %s8, 1
    %p61 = scmp.ne.s32.totalorder %s56, %s58
    %p62 = scmp.eq.s32.totalorder %s8, 0
    %p63 = por %p61, %p62
    %p64 = scmp.ne.s32.totalorder %s56, %s58
    %p65 = scmp.eq.s32.totalorder %s13, 1
    %p66 = por %p64, %p65
    %p67 = scmp.ne.s32.totalorder %s58, %s59
    %p68 = scmp.eq.s32.totalorder %s13, 0
    %p69 = por %p67, %p68
    %p70 = scmp.ne.s32.totalorder %s58, %s59
    %p71 = scmp.eq.s32.totalorder %s14, 1
    %p72 = por %p70, %p71
    %p74 = scmp.ne.s32.totalorder %s59, %s73
    %p75 = scmp.eq.s32.totalorder %s14, 0
    %p76 = por %p74, %p75
    %s77 = ssub.s32 %s15, %s27
    %s78 = ssub.s32 %s16, %s23
    %s79 = sor.u32 %s77, %s78
    %p80 = scmp.eq.s32.totalorder %s79, 0
    %s82 = sadd.s32 %s81, 1
    %s83 = scalar_select %p80, %s81, %s82
    %p86 = pneg %p80
    %p87 = scmp.eq.s32.totalorder %s8, 1
    %p88 = por %p86, %p87
    %p89 = scmp.ne.s32.totalorder %s81, %s84
    %p90 = scmp.eq.s32.totalorder %s8, 0
    %p91 = por %p89, %p90
    %p92 = scmp.ne.s32.totalorder %s81, %s84
    %p93 = scmp.eq.s32.totalorder %s13, 1
    %p94 = por %p92, %p93
    %p95 = scmp.ne.s32.totalorder %s84, %s85
    %p96 = scmp.eq.s32.totalorder %s13, 0
    %p97 = por %p95, %p96
    %p98 = scmp.ne.s32.totalorder %s84, %s85
    %p99 = scmp.eq.s32.totalorder %s14, 1
    %p100 = por %p98, %p99
    %p102 = scmp.ne.s32.totalorder %s85, %s101
    %p103 = scmp.eq.s32.totalorder %s14, 0
    %p104 = por %p102, %p103
    %p105 = scmp.le.s32.totalorder 1, %s8
    %p106 = scmp.lt.s32.totalorder %s8, 3
    %p107 = pnand %p105, %p106
    %p108 = pneg %p107
    // Predicated region
    $region9: #{orepa_forward.2} parent=5 // pred_check
      _
    $region10: #{orepa_forward.2} parent=5 // pred_check_branch
      %110 = sbr.rel (%p107) target = $region12
    $region11: #{orepa_forward.2} parent=5 // pred_region
      %s111 = ssub.s32 %s8, 1
      // Predicated region
      $region13: #{orepa_forward.2} parent=11 // pred_check
        %p112 = pneg %p69
      $region14: #{orepa_forward.2} parent=11 // pred_check_branch
        %114 = sbr.rel (%p112) target = $region16
      $region15: #{orepa_forward.2} parent=11 // pred_region
        _
      $region16: #{orepa_forward.2} parent=11 // pred_fallthru
        _
    $region12: #{orepa_forward.2} parent=5 // pred_fallthru
      _
    %p115 = scmp.lt.s32.totalorder %s8, 2
    // Predicated region
    $region17: #{orepa_forward.2} parent=5 // pred_check
      %p116 = pneg %p115
    $region18: #{orepa_forward.2} parent=5 // pred_check_branch
      %118 = sbr.rel (%p116) target = $region20
    $region19: #{orepa_forward.2} parent=5 // pred_region
      // Predicated region
      $region21: #{orepa_forward.2} parent=19 // pred_check
        %p119 = pneg %p42
      $region22: #{orepa_forward.2} parent=19 // pred_check_branch
        %121 = sbr.rel (%p119) target = $region24
      $region23: #{orepa_forward.2} parent=19 // pred_region
        %s122 = smul.u32 32, %s16
        %p123 = scmp.lt.s32.totalorder %s15, 1
        %s124 = scalar_select %p123, %s15, 1
        %p125 = scmp.lt.s32.totalorder %s122, 31
        %s126 = scalar_select %p125, %s122, 31
        %s127 = smul.addr %s124, 32
        %s128 = sadd.s32 %s126, %s127
        %s129 = smul.addr %s128, 4
        %s130 = scalar_lea.vmem %s0, %s129
        %s131 = smul.u32 32, %s16
      $region24: #{orepa_forward.2} parent=19 // pred_fallthru
        _
    $region20: #{orepa_forward.2} parent=5 // pred_fallthru
      _
    %p132 = scmp.le.s32.totalorder 1, %s8
    %p133 = scmp.lt.s32.totalorder %s8, 3
    %p134 = pnand %p132, %p133
    %p135 = pneg %p134
    // Predicated region
    $region25: #{orepa_forward.2} parent=5 // pred_check
      _
    $region26: #{orepa_forward.2} parent=5 // pred_check_branch
      %137 = sbr.rel (%p134) target = $region28
    $region27: #{orepa_forward.2} parent=5 // pred_region
      %s138 = ssub.s32 %s8, 1
      %s139 = smul.u32 32, %s18
      %p140 = scmp.lt.s32.totalorder %s17, 1
      %s141 = scalar_select %p140, %s17, 1
      %p142 = scmp.lt.s32.totalorder %s139, 31
      %s143 = scalar_select %p142, %s139, 31
      %s144 = smul.addr %s141, 32
      %s145 = sadd.s32 %s143, %s144
      %s146 = smul.addr %s145, 4
      %s147 = scalar_lea.vmem %s0, %s146
      %p148 = pneg %p48
      %p149 = pneg %p45
      %p150 = pneg %p69
      %p151 = pneg %p66
      %p152 = pneg %p97
      %p153 = pneg %p94
      %p154 = scmp.lt.s32.totalorder %s17, 1
      %s155 = scalar_select %p154, %s17, 1
      %p156 = scmp.lt.s32.totalorder %s18, 0
      %s157 = scalar_select %p156, %s18, 0
      %s158 = sadd.s32 %s157, %s155
      %s159 = smul.addr %s158, 2
      %s160 = scalar_lea.vmem %s2, %s159
      %s161 = smul.u32 32, %s18
      %p162 = scmp.lt.s32.totalorder %s17, 1
      %s163 = scalar_select %p162, %s17, 1
      %p164 = scmp.lt.s32.totalorder %s161, 31
      %s165 = scalar_select %p164, %s161, 31
      %s166 = smul.addr %s163, 32
      %s167 = sadd.s32 %s165, %s166
      %s168 = smul.addr %s167, 4
      %s169 = scalar_lea.vmem %s0, %s168
      %s170 = smul.u32 32, %s18
      %p171 = scmp.lt.s32.totalorder %s17, 1
      %s172 = scalar_select %p171, %s17, 1
      %p173 = scmp.lt.s32.totalorder %s18, 0
      %s174 = scalar_select %p173, %s18, 0
      %s175 = sadd.s32 %s174, %s172
      %s176 = smul.addr %s175, 2
      %s177 = scalar_lea.vmem %s2, %s176
      %v179 = vld [vmem:[%s169] sm:$0xf]
      %v180 = vld [vmem:[%s169 + $0x4] sm:$0xf]
      %v181 = vld [vmem:[%s169 + $0x8] sm:$0xf]
      %v182 = vld [vmem:[%s169 + $0xc] sm:$0xf]
      %v183 = vld [vmem:[%s169 + $0x10] sm:$0xf]
      %v184 = vld [vmem:[%s169 + $0x14] sm:$0xf]
      %v185 = vld [vmem:[%s169 + $0x18] sm:$0xf]
      %v186 = vld [vmem:[%s169 + $0x1c] sm:$0xf]
      %v187 = vld [vmem:[%s169 + $0x20] sm:$0xf]
      %v188 = vld [vmem:[%s169 + $0x24] sm:$0xf]
      %v189 = vld [vmem:[%s169 + $0x28] sm:$0xf]
      %v190 = vld [vmem:[%s169 + $0x2c] sm:$0xf]
      %v191 = vld [vmem:[%s169 + $0x30] sm:$0xf]
      %v192 = vld [vmem:[%s169 + $0x34] sm:$0xf]
      %v193 = vld [vmem:[%s169 + $0x38] sm:$0xf]
      %v194 = vld [vmem:[%s169 + $0x3c] sm:$0xf]
      %v195 = vld [vmem:[%s169 + $0x40] sm:$0xf]
      %v196 = vld [vmem:[%s169 + $0x44] sm:$0xf]
      %v197 = vld [vmem:[%s169 + $0x48] sm:$0xf]
      %v198 = vld [vmem:[%s169 + $0x4c] sm:$0xf]
      %v199 = vld [vmem:[%s169 + $0x50] sm:$0xf]
      %v200 = vld [vmem:[%s169 + $0x54] sm:$0xf]
      %v201 = vld [vmem:[%s169 + $0x58] sm:$0xf]
      %v202 = vld [vmem:[%s169 + $0x5c] sm:$0xf]
      %v203 = vld [vmem:[%s169 + $0x60] sm:$0xf]
      %v204 = vld [vmem:[%s169 + $0x64] sm:$0xf]
      %v205 = vld [vmem:[%s169 + $0x68] sm:$0xf]
      %v206 = vld [vmem:[%s169 + $0x6c] sm:$0xf]
      %v207 = vld [vmem:[%s169 + $0x70] sm:$0xf]
      %v208 = vld [vmem:[%s169 + $0x74] sm:$0xf]
      %v209 = vld [vmem:[%s169 + $0x78] sm:$0xf]
      %v210 = vld [vmem:[%s169 + $0x7c] sm:$0xf]
      %v211 = vld [vmem:[%s1] sm:$0xf]
      %v212 = vld [vmem:[%s1 + $0x4] sm:$0xf]
      %v213 = vld [vmem:[%s1 + $0x8] sm:$0xf]
      %v214 = vld [vmem:[%s1 + $0xc] sm:$0xf]
      %v215 = vld [vmem:[%s1 + $0x10] sm:$0xf]
      %v216 = vld [vmem:[%s1 + $0x14] sm:$0xf]
      %v217 = vld [vmem:[%s1 + $0x18] sm:$0xf]
      %v218 = vld [vmem:[%s1 + $0x1c] sm:$0xf]
      %v219 = vld [vmem:[%s1 + $0x20] sm:$0xf]
      %v220 = vld [vmem:[%s1 + $0x24] sm:$0xf]
      %v221 = vld [vmem:[%s1 + $0x28] sm:$0xf]
      %v222 = vld [vmem:[%s1 + $0x2c] sm:$0xf]
      %v223 = vld [vmem:[%s1 + $0x30] sm:$0xf]
      %v224 = vld [vmem:[%s1 + $0x34] sm:$0xf]
      %v225 = vld [vmem:[%s1 + $0x38] sm:$0xf]
      %v226 = vld [vmem:[%s1 + $0x3c] sm:$0xf]
      %v259 = vunpack.c.l.b16 %v179
      %v260 = vunpack.c.l.b16 %v180
      %v261 = vunpack.c.l.b16 %v181
      %v262 = vunpack.c.l.b16 %v182
      %v263 = vunpack.c.l.b16 %v183
      %v264 = vunpack.c.l.b16 %v184
      %v265 = vunpack.c.l.b16 %v185
      %v266 = vunpack.c.l.b16 %v186
      %v267 = vunpack.c.l.b16 %v187
      %v268 = vunpack.c.l.b16 %v188
      %v269 = vunpack.c.l.b16 %v189
      %v270 = vunpack.c.l.b16 %v190
      %v271 = vunpack.c.l.b16 %v191
      %v272 = vunpack.c.l.b16 %v192
      %v273 = vunpack.c.l.b16 %v193
      %v274 = vunpack.c.l.b16 %v194
      %v275 = vunpack.c.l.b16 %v195
      %v276 = vunpack.c.l.b16 %v196
      %v277 = vunpack.c.l.b16 %v197
      %v278 = vunpack.c.l.b16 %v198
      %v279 = vunpack.c.l.b16 %v199
      %v280 = vunpack.c.l.b16 %v200
      %v281 = vunpack.c.l.b16 %v201
      %v282 = vunpack.c.l.b16 %v202
      %v283 = vunpack.c.l.b16 %v203
      %v284 = vunpack.c.l.b16 %v204
      %v285 = vunpack.c.l.b16 %v205
      %v286 = vunpack.c.l.b16 %v206
      %v287 = vunpack.c.l.b16 %v207
      %v288 = vunpack.c.l.b16 %v208
      %v289 = vunpack.c.l.b16 %v209
      %v290 = vunpack.c.l.b16 %v210
      %v291 = vpack.c.b16 %v260, %v259
      %v292 = vpack.c.b16 %v262, %v261
      %v293 = vpack.c.b16 %v264, %v263
      %v294 = vpack.c.b16 %v266, %v265
      %v295 = vpack.c.b16 %v268, %v267
      %v296 = vpack.c.b16 %v270, %v269
      %v297 = vpack.c.b16 %v272, %v271
      %v298 = vpack.c.b16 %v274, %v273
      %v299 = vpack.c.b16 %v276, %v275
      %v300 = vpack.c.b16 %v278, %v277
      %v301 = vpack.c.b16 %v280, %v279
      %v302 = vpack.c.b16 %v282, %v281
      %v303 = vpack.c.b16 %v284, %v283
      %v304 = vpack.c.b16 %v286, %v285
      %v305 = vpack.c.b16 %v288, %v287
      %v306 = vpack.c.b16 %v290, %v289
      %v339 = vunpack.c.l.b16 %v211
      %v340 = vunpack.c.l.b16 %v212
      %v341 = vunpack.c.l.b16 %v213
      %v342 = vunpack.c.l.b16 %v214
      %v343 = vunpack.c.l.b16 %v215
      %v344 = vunpack.c.l.b16 %v216
      %v345 = vunpack.c.l.b16 %v217
      %v346 = vunpack.c.l.b16 %v218
      %v347 = vunpack.c.l.b16 %v219
      %v348 = vunpack.c.l.b16 %v220
      %v349 = vunpack.c.l.b16 %v221
      %v350 = vunpack.c.l.b16 %v222
      %v351 = vunpack.c.l.b16 %v223
      %v352 = vunpack.c.l.b16 %v224
      %v353 = vunpack.c.l.b16 %v225
      %v354 = vunpack.c.l.b16 %v226
      %v355 = vpack.c.b16 %v340, %v339
      %v356 = vpack.c.b16 %v342, %v341
      %v357 = vpack.c.b16 %v344, %v343
      %v358 = vpack.c.b16 %v346, %v345
      %v359 = vpack.c.b16 %v348, %v347
      %v360 = vpack.c.b16 %v350, %v349
      %v361 = vpack.c.b16 %v352, %v351
      %v362 = vpack.c.b16 %v354, %v353
      %371 = vmatprep.subr.bf16.mxu0 0
      %372 = vmatpush1.bf16.msra.mxu0 %v362
      %373 = vmatprep.subr.bf16.mxu0 0
      %374 = vmatpush1.bf16.msra.mxu0 %v361
      %375 = vmatprep.subr.bf16.mxu0 0
      %376 = vmatpush1.bf16.msra.mxu0 %v360
      %377 = vmatprep.subr.bf16.mxu0 0
      %378 = vmatpush1.bf16.msra.mxu0 %v359
      %379 = vmatprep.subr.bf16.mxu0 0
      %380 = vmatpush1.bf16.msra.mxu0 %v358
      %381 = vmatprep.subr.bf16.mxu0 0
      %382 = vmatpush1.bf16.msra.mxu0 %v357
      %383 = vmatprep.subr.bf16.mxu0 0
      %384 = vmatpush1.bf16.msra.mxu0 %v356
      %385 = vmatprep.subr.bf16.mxu0 0
      %386 = vmatpush1.bf16.msra.mxu0 %v355
      %387 = vmatprep.subr.bf16.mxu0 0
      %388 = vmatpush2.bf16.msra.mxu0 0
      %389 = vmatprep.subr.bf16.mxu0 0
      %390 = vmatpush2.bf16.msra.mxu0 0
      %391 = vmatprep.subr.bf16.mxu0 0
      %392 = vmatpush2.bf16.msra.mxu0 0
      %393 = vmatprep.subr.bf16.mxu0 0
      %394 = vmatpush2.bf16.msra.mxu0 0
      %395 = vmatprep.subr.bf16.mxu0 0
      %396 = vmatpush2.bf16.msra.mxu0 0
      %397 = vmatprep.subr.bf16.mxu0 0
      %398 = vmatpush2.bf16.msra.mxu0 0
      %399 = vmatprep.subr.bf16.mxu0 0
      %400 = vmatpush2.bf16.msra.mxu0 0
      %401 = vmatprep.subr.bf16.mxu0 0
      %402 = vmatpush2.bf16.msra.mxu0 0
      %403 = vmatprep.mubr.bf16.mxu0 0
      %404 = vmatmul.mubr.bf16.gmra.mxu0 %v291
      %v405 = vpop.f32.mrf.mxu0
      %v406 = vadd.f32 0.0, %v405
      %v407 = vpop.f32.mrf.mxu0
      %v408 = vpop.f32.mrf.mxu0
      %v409 = vadd.f32 0.0, %v408
      %v410 = vpop.f32.mrf.mxu0
      %411 = vmatprep.mubr.bf16.mxu0 0
      %412 = vmatmul.mubr.bf16.gmra.mxu0 %v292
      %v413 = vpop.f32.mrf.mxu0
      %v414 = vadd.f32 0.0, %v413
      %v415 = vpop.f32.mrf.mxu0
      %v416 = vpop.f32.mrf.mxu0
      %v417 = vadd.f32 0.0, %v416
      %v418 = vpop.f32.mrf.mxu0
      %419 = vmatprep.mubr.bf16.mxu0 0
      %420 = vmatmul.mubr.bf16.gmra.mxu0 %v293
      %v421 = vpop.f32.mrf.mxu0
      %v422 = vadd.f32 0.0, %v421
      %v423 = vpop.f32.mrf.mxu0
      %v424 = vpop.f32.mrf.mxu0
      %v425 = vadd.f32 0.0, %v424
      %v426 = vpop.f32.mrf.mxu0
      %427 = vmatprep.mubr.bf16.mxu0 0
      %428 = vmatmul.mubr.bf16.gmra.mxu0 %v294
      %v429 = vpop.f32.mrf.mxu0
      %v430 = vadd.f32 0.0, %v429
      %v431 = vpop.f32.mrf.mxu0
      %v432 = vpop.f32.mrf.mxu0
      %v433 = vadd.f32 0.0, %v432
      %v434 = vpop.f32.mrf.mxu0
      %435 = vmatprep.mubr.bf16.mxu0 0
      %436 = vmatmul.mubr.bf16.gmra.mxu0 %v295
      %v437 = vpop.f32.mrf.mxu0
      %v438 = vadd.f32 0.0, %v437
      %v439 = vpop.f32.mrf.mxu0
      %v440 = vpop.f32.mrf.mxu0
      %v441 = vadd.f32 0.0, %v440
      %v442 = vpop.f32.mrf.mxu0
      %443 = vmatprep.mubr.bf16.mxu0 0
      %444 = vmatmul.mubr.bf16.gmra.mxu0 %v296
      %v445 = vpop.f32.mrf.mxu0
      %v446 = vadd.f32 0.0, %v445
      %v447 = vpop.f32.mrf.mxu0
      %v448 = vpop.f32.mrf.mxu0
      %v449 = vadd.f32 0.0, %v448
      %v450 = vpop.f32.mrf.mxu0
      %451 = vmatprep.mubr.bf16.mxu0 0
      %452 = vmatmul.mubr.bf16.gmra.mxu0 %v297
      %v453 = vpop.f32.mrf.mxu0
      %v454 = vadd.f32 0.0, %v453
      %v455 = vpop.f32.mrf.mxu0
      %v456 = vpop.f32.mrf.mxu0
      %v457 = vadd.f32 0.0, %v456
      %v458 = vpop.f32.mrf.mxu0
      %459 = vmatprep.mubr.bf16.mxu0 0
      %460 = vmatmul.mubr.bf16.gmra.mxu0 %v298
      %v461 = vpop.f32.mrf.mxu0
      %v462 = vadd.f32 0.0, %v461
      %v463 = vpop.f32.mrf.mxu0
      %v464 = vpop.f32.mrf.mxu0
      %v465 = vadd.f32 0.0, %v464
      %v466 = vpop.f32.mrf.mxu0
      %467 = vmatprep.mubr.bf16.mxu0 0
      %468 = vmatmul.mubr.bf16.gmra.mxu0 %v299
      %v469 = vpop.f32.mrf.mxu0
      %v470 = vadd.f32 0.0, %v469
      %v471 = vpop.f32.mrf.mxu0
      %v472 = vpop.f32.mrf.mxu0
      %v473 = vadd.f32 0.0, %v472
      %v474 = vpop.f32.mrf.mxu0
      %475 = vmatprep.mubr.bf16.mxu0 0
      %476 = vmatmul.mubr.bf16.gmra.mxu0 %v300
      %v477 = vpop.f32.mrf.mxu0
      %v478 = vadd.f32 0.0, %v477
      %v479 = vpop.f32.mrf.mxu0
      %v480 = vpop.f32.mrf.mxu0
      %v481 = vadd.f32 0.0, %v480
      %v482 = vpop.f32.mrf.mxu0
      %483 = vmatprep.mubr.bf16.mxu0 0
      %484 = vmatmul.mubr.bf16.gmra.mxu0 %v301
      %v485 = vpop.f32.mrf.mxu0
      %v486 = vadd.f32 0.0, %v485
      %v487 = vpop.f32.mrf.mxu0
      %v488 = vpop.f32.mrf.mxu0
      %v489 = vadd.f32 0.0, %v488
      %v490 = vpop.f32.mrf.mxu0
      %491 = vmatprep.mubr.bf16.mxu0 0
      %492 = vmatmul.mubr.bf16.gmra.mxu0 %v302
      %v493 = vpop.f32.mrf.mxu0
      %v494 = vadd.f32 0.0, %v493
      %v495 = vpop.f32.mrf.mxu0
      %v496 = vpop.f32.mrf.mxu0
      %v497 = vadd.f32 0.0, %v496
      %v498 = vpop.f32.mrf.mxu0
      %499 = vmatprep.mubr.bf16.mxu0 0
      %500 = vmatmul.mubr.bf16.gmra.mxu0 %v303
      %v501 = vpop.f32.mrf.mxu0
      %v502 = vadd.f32 0.0, %v501
      %v503 = vpop.f32.mrf.mxu0
      %v504 = vpop.f32.mrf.mxu0
      %v505 = vadd.f32 0.0, %v504
      %v506 = vpop.f32.mrf.mxu0
      %507 = vmatprep.mubr.bf16.mxu0 0
      %508 = vmatmul.mubr.bf16.gmra.mxu0 %v304
      %v509 = vpop.f32.mrf.mxu0
      %v510 = vadd.f32 0.0, %v509
      %v511 = vpop.f32.mrf.mxu0
      %v512 = vpop.f32.mrf.mxu0
      %v513 = vadd.f32 0.0, %v512
      %v514 = vpop.f32.mrf.mxu0
      %515 = vmatprep.mubr.bf16.mxu0 0
      %516 = vmatmul.mubr.bf16.gmra.mxu0 %v305
      %v517 = vpop.f32.mrf.mxu0
      %v518 = vadd.f32 0.0, %v517
      %v519 = vpop.f32.mrf.mxu0
      %v520 = vpop.f32.mrf.mxu0
      %v521 = vadd.f32 0.0, %v520
      %v522 = vpop.f32.mrf.mxu0
      %523 = vmatprep.mubr.bf16.mxu0 0
      %524 = vmatmul.mubr.bf16.gmra.mxu0 %v306
      %v525 = vpop.f32.mrf.mxu0
      %v526 = vadd.f32 0.0, %v525
      %v527 = vpop.f32.mrf.mxu0
      %v528 = vpop.f32.mrf.mxu0
      %v529 = vadd.f32 0.0, %v528
      %v530 = vpop.f32.mrf.mxu0
      %531 = vdwg.mxu0
      %v532 = vadd.f32 %v406, %v409
      %v533 = vadd.f32 %v532, %v414
      %v534 = vadd.f32 %v533, %v417
      %v535 = vadd.f32 %v534, %v422
      %v536 = vadd.f32 %v535, %v425
      %v537 = vadd.f32 %v536, %v430
      %v538 = vadd.f32 %v537, %v433
      %v539 = vadd.f32 %v538, %v438
      %v540 = vadd.f32 %v539, %v441
      %v541 = vadd.f32 %v540, %v446
      %v542 = vadd.f32 %v541, %v449
      %v543 = vadd.f32 %v542, %v454
      %v544 = vadd.f32 %v543, %v457
      %v545 = vadd.f32 %v544, %v462
      %v546 = vadd.f32 %v545, %v465
      %v547 = vadd.f32 %v546, %v470
      %v548 = vadd.f32 %v547, %v473
      %v549 = vadd.f32 %v548, %v478
      %v550 = vadd.f32 %v549, %v481
      %v551 = vadd.f32 %v550, %v486
      %v552 = vadd.f32 %v551, %v489
      %v553 = vadd.f32 %v552, %v494
      %v554 = vadd.f32 %v553, %v497
      %v555 = vadd.f32 %v554, %v502
      %v556 = vadd.f32 %v555, %v505
      %v557 = vadd.f32 %v556, %v510
      %v558 = vadd.f32 %v557, %v513
      %v559 = vadd.f32 %v558, %v518
      %v560 = vadd.f32 %v559, %v521
      %v561 = vadd.f32 %v560, %v526
      %v562 = vadd.f32 %v561, %v529
      %v563 = vrot.slane %v562, 4
      %v564 = vadd.f32 %v562, %v563
      %v565 = vrot.slane %v564, 2
      %v566 = vadd.f32 %v564, %v565
      %v567 = vrot.slane %v566, 1
      %v568 = vadd.f32 %v566, %v567
      %v569 = vmul.f32 %v406, %v406
      %v570 = vmul.f32 %v409, %v409
      %v571 = vmul.f32 %v414, %v414
      %v572 = vmul.f32 %v417, %v417
      %v573 = vmul.f32 %v422, %v422
      %v574 = vmul.f32 %v425, %v425
      %v575 = vmul.f32 %v430, %v430
      %v576 = vmul.f32 %v433, %v433
      %v577 = vmul.f32 %v438, %v438
      %v578 = vmul.f32 %v441, %v441
      %v579 = vmul.f32 %v446, %v446
      %v580 = vmul.f32 %v449, %v449
      %v581 = vmul.f32 %v454, %v454
      %v582 = vmul.f32 %v457, %v457
      %v583 = vmul.f32 %v462, %v462
      %v584 = vmul.f32 %v465, %v465
      %v585 = vmul.f32 %v470, %v470
      %v586 = vmul.f32 %v473, %v473
      %v587 = vmul.f32 %v478, %v478
      %v588 = vmul.f32 %v481, %v481
      %v589 = vmul.f32 %v486, %v486
      %v590 = vmul.f32 %v489, %v489
      %v591 = vmul.f32 %v494, %v494
      %v592 = vmul.f32 %v497, %v497
      %v593 = vmul.f32 %v502, %v502
      %v594 = vmul.f32 %v505, %v505
      %v595 = vmul.f32 %v510, %v510
      %v596 = vmul.f32 %v513, %v513
      %v597 = vmul.f32 %v518, %v518
      %v598 = vmul.f32 %v521, %v521
      %v599 = vmul.f32 %v526, %v526
      %v600 = vmul.f32 %v529, %v529
      %v601 = vadd.f32 %v569, %v570
      %v602 = vadd.f32 %v601, %v571
      %v603 = vadd.f32 %v602, %v572
      %v604 = vadd.f32 %v603, %v573
      %v605 = vadd.f32 %v604, %v574
      %v606 = vadd.f32 %v605, %v575
      %v607 = vadd.f32 %v606, %v576
      %v608 = vadd.f32 %v607, %v577
      %v609 = vadd.f32 %v608, %v578
      %v610 = vadd.f32 %v609, %v579
      %v611 = vadd.f32 %v610, %v580
      %v612 = vadd.f32 %v611, %v581
      %v613 = vadd.f32 %v612, %v582
      %v614 = vadd.f32 %v613, %v583
      %v615 = vadd.f32 %v614, %v584
      %v616 = vadd.f32 %v615, %v585
      %v617 = vadd.f32 %v616, %v586
      %v618 = vadd.f32 %v617, %v587
      %v619 = vadd.f32 %v618, %v588
      %v620 = vadd.f32 %v619, %v589
      %v621 = vadd.f32 %v620, %v590
      %v622 = vadd.f32 %v621, %v591
      %v623 = vadd.f32 %v622, %v592
      %v624 = vadd.f32 %v623, %v593
      %v625 = vadd.f32 %v624, %v594
      %v626 = vadd.f32 %v625, %v595
      %v627 = vadd.f32 %v626, %v596
      %v628 = vadd.f32 %v627, %v597
      %v629 = vadd.f32 %v628, %v598
      %v630 = vadd.f32 %v629, %v599
      %v631 = vadd.f32 %v630, %v600
      %v632 = vrot.slane %v631, 4
      %v633 = vadd.f32 %v631, %v632
      %v634 = vrot.slane %v633, 2
      %v635 = vadd.f32 %v633, %v634
      %v636 = vrot.slane %v635, 1
      %v637 = vadd.f32 %v635, %v636
      %vm638 = vcmask 1040384
      %v639 = vsel %vm638, %v568, %v637
      %640 = vst [vmem:[%s177] sm:$0x3] %v639
      %p641 = scmp.lt.s32.totalorder %s17, 1
      %s642 = scalar_select %p641, %s17, 1
      %p643 = scmp.lt.s32.totalorder %s18, 0
      %s644 = scalar_select %p643, %s18, 0
      %s645 = sadd.s32 %s644, %s642
      %s646 = smul.addr %s645, 2
      %s647 = scalar_lea.vmem %s2, %s646
      // Predicated region
      $region29: #{orepa_forward.2} parent=27 // pred_check
        %p648 = pneg %p94
      $region30: #{orepa_forward.2} parent=27 // pred_check_branch
        %650 = sbr.rel (%p648) target = $region32
      $region31: #{orepa_forward.2} parent=27 // pred_region
        _
      $region32: #{orepa_forward.2} parent=27 // pred_fallthru
        _
    $region28: #{orepa_forward.2} parent=5 // pred_fallthru
      _
    %p651 = scmp.le.s32.totalorder 2, %s8
    // Predicated region
    $region33: #{orepa_forward.2} parent=5 // pred_check
      %p652 = pneg %p651
    $region34: #{orepa_forward.2} parent=5 // pred_check_branch
      %654 = sbr.rel (%p652) target = $region36
    $region35: #{orepa_forward.2} parent=5 // pred_region
      %s655 = ssub.s32 %s8, 2
      // Predicated region
      $region37: #{orepa_forward.2} parent=35 // pred_check
        %p656 = pneg %p100
      $region38: #{orepa_forward.2} parent=35 // pred_check_branch
        %658 = sbr.rel (%p656) target = $region40
      $region39: #{orepa_forward.2} parent=35 // pred_region
        %p659 = scmp.lt.s32.totalorder %s19, 1
        %s660 = scalar_select %p659, %s19, 1
        %p661 = scmp.lt.s32.totalorder %s20, 0
        %s662 = scalar_select %p661, %s20, 0
        %s663 = sadd.s32 %s662, %s660
        %s664 = smul.addr %s663, 2
        %s665 = scalar_lea.vmem %s2, %s664
      $region40: #{orepa_forward.2} parent=35 // pred_fallthru
        _
    $region36: #{orepa_forward.2} parent=5 // pred_fallthru
      _
  $region6: #{orepa_forward.2} parent=0 // loop_footer
    %s12 = sadd.s32 1, %s8
  $region7: #{orepa_forward.2} parent=0 // loop_footer_branch
    %7 = sbr.rel target = $region3
  $region8: #{orepa_forward.2} parent=0 // loop_exit
    _

// kernel: orepa_forward.3
$region0: #{orepa_forward.3}
  #allocation0 [shape = 'u32[]', space=smem, size = 0x4, offset = 0x4, fixed_abs, tag = 'smem constant byte address 0x4 - core index']
  #allocation1 [shape = 'u32[144,128]{1,0:T(1,128)}', space=vmem, size = 0x12000, scoped, tag = 'internal scratch']
  %s0 = inlined_call_operand.vmem [shape: bf16[2,256,128], index: 0, kind: input, shape index: {}]
  %s1 = inlined_call_operand.vmem [shape: bf16[128,128], index: 1, kind: input, shape index: {}]
  %s2 = inlined_call_operand.vmem [shape: f32[1,128], index: 2, kind: input, shape index: {}]
  %s3 = inlined_call_operand.vmem [shape: f32[1,128], index: 3, kind: input, shape index: {}]
  %s4 = inlined_call_operand.vmem [shape: f32[2,8,256], index: 4, kind: output, shape index: {}]
  %s5 = sld [smem:[#allocation0]]
  $region49: #{orepa_forward.3} parent=0
    _
  %s7 = ssub.s32 1, %s5
  %s8 = scalar_select 0, %s7, %s5
  loop: start=0, step=1, limit=4
  $region2: #{orepa_forward.3} parent=0 // loop_pre_header
    _
  $region3: #{orepa_forward.3} parent=0 // loop_header
    %s10 = sphi 0, %s14
    %p11 = scmp.ge.s32.totalorder %s10, 4
    %s17 = sphi 0, %s29
    %s18 = sphi 0, %s25
    %s19 = sphi 0, %s17
    %s20 = sphi 0, %s18
    %s21 = sphi 0, %s19
    %s22 = sphi 0, %s20
    %s34 = sphi 0, %s36
    %s37 = sphi 0, %s34
    %s38 = sphi 0, %s37
    %s54 = sphi 0, %s38
    %s58 = sphi 0, %s58
    %s60 = sphi 0, %s58
    %s61 = sphi 0, %s60
    %s75 = sphi 0, %s61
    %s79 = sphi 0, %s79
    %s81 = sphi 0, %s79
    %s82 = sphi 0, %s81
    %s96 = sphi 0, %s82
    %s100 = sphi 0, %s100
    %s102 = sphi 0, %s100
    %s103 = sphi 0, %s102
    %s117 = sphi 0, %s103
    %s125 = sphi 0, %s127
    %s128 = sphi 0, %s125
    %s129 = sphi 0, %s128
    %s145 = sphi 0, %s129
  $region4: #{orepa_forward.3} parent=0 // loop_header_branch
    %13 = sbr.rel (%p11) target = $region8
  $region5: #{orepa_forward.3} parent=0 // loop_body
    %s15 = ssub.s32 %s10, 1
    %s16 = ssub.s32 %s10, 2
    %s23 = sadd.s32 1, %s18
    %p24 = scmp.ge.s32.totalorder %s23, 1
    %s25 = scalar_select %p24, 0, %s23
    %s26 = sadd.s32 1, %s17
    %s27 = scalar_select %p24, %s26, %s17
    %p28 = scmp.ge.s32.totalorder %s27, 2
    %s29 = scalar_select %p28, 0, %s27
    %s30 = ssub.s32 %s17, %s29
    %s31 = ssub.s32 %s18, %s25
    %s32 = sor.u32 %s30, %s31
    %p33 = scmp.eq.s32.totalorder %s32, 0
    %s35 = sadd.s32 %s34, 1
    %s36 = scalar_select %p33, %s34, %s35
    %p39 = pneg %p33
    %p40 = scmp.eq.s32.totalorder %s10, 1
    %p41 = por %p39, %p40
    %p42 = scmp.ne.s32.totalorder %s34, %s37
    %p43 = scmp.eq.s32.totalorder %s10, 0
    %p44 = por %p42, %p43
    %p45 = scmp.ne.s32.totalorder %s34, %s37
    %p46 = scmp.eq.s32.totalorder %s15, 1
    %p47 = por %p45, %p46
    %p48 = scmp.ne.s32.totalorder %s37, %s38
    %p49 = scmp.eq.s32.totalorder %s15, 0
    %p50 = por %p48, %p49
    %p51 = scmp.ne.s32.totalorder %s37, %s38
    %p52 = scmp.eq.s32.totalorder %s16, 1
    %p53 = por %p51, %p52
    %p55 = scmp.ne.s32.totalorder %s38, %s54
    %p56 = scmp.eq.s32.totalorder %s16, 0
    %p57 = por %p55, %p56
    %s59 = sadd.s32 %s58, 1
    %p62 = scmp.eq.s32.totalorder %s10, 1
    %p63 = scmp.ne.s32.totalorder %s58, %s60
    %p64 = scmp.eq.s32.totalorder %s10, 0
    %p65 = por %p63, %p64
    %p66 = scmp.ne.s32.totalorder %s58, %s60
    %p67 = scmp.eq.s32.totalorder %s15, 1
    %p68 = por %p66, %p67
    %p69 = scmp.ne.s32.totalorder %s60, %s61
    %p70 = scmp.eq.s32.totalorder %s15, 0
    %p71 = por %p69, %p70
    %p72 = scmp.ne.s32.totalorder %s60, %s61
    %p73 = scmp.eq.s32.totalorder %s16, 1
    %p74 = por %p72, %p73
    %p76 = scmp.ne.s32.totalorder %s61, %s75
    %p77 = scmp.eq.s32.totalorder %s16, 0
    %p78 = por %p76, %p77
    %s80 = sadd.s32 %s79, 1
    %p83 = scmp.eq.s32.totalorder %s10, 1
    %p84 = scmp.ne.s32.totalorder %s79, %s81
    %p85 = scmp.eq.s32.totalorder %s10, 0
    %p86 = por %p84, %p85
    %p87 = scmp.ne.s32.totalorder %s79, %s81
    %p88 = scmp.eq.s32.totalorder %s15, 1
    %p89 = por %p87, %p88
    %p90 = scmp.ne.s32.totalorder %s81, %s82
    %p91 = scmp.eq.s32.totalorder %s15, 0
    %p92 = por %p90, %p91
    %p93 = scmp.ne.s32.totalorder %s81, %s82
    %p94 = scmp.eq.s32.totalorder %s16, 1
    %p95 = por %p93, %p94
    %p97 = scmp.ne.s32.totalorder %s82, %s96
    %p98 = scmp.eq.s32.totalorder %s16, 0
    %p99 = por %p97, %p98
    %s101 = sadd.s32 %s100, 1
    %p104 = scmp.eq.s32.totalorder %s10, 1
    %p105 = scmp.ne.s32.totalorder %s100, %s102
    %p106 = scmp.eq.s32.totalorder %s10, 0
    %p107 = por %p105, %p106
    %p108 = scmp.ne.s32.totalorder %s100, %s102
    %p109 = scmp.eq.s32.totalorder %s15, 1
    %p110 = por %p108, %p109
    %p111 = scmp.ne.s32.totalorder %s102, %s103
    %p112 = scmp.eq.s32.totalorder %s15, 0
    %p113 = por %p111, %p112
    %p114 = scmp.ne.s32.totalorder %s102, %s103
    %p115 = scmp.eq.s32.totalorder %s16, 1
    %p116 = por %p114, %p115
    %p118 = scmp.ne.s32.totalorder %s103, %s117
    %p119 = scmp.eq.s32.totalorder %s16, 0
    %p120 = por %p118, %p119
    %s121 = ssub.s32 %s17, %s29
    %s122 = ssub.s32 %s18, %s25
    %s123 = sor.u32 %s121, %s122
    %p124 = scmp.eq.s32.totalorder %s123, 0
    %s126 = sadd.s32 %s125, 1
    %s127 = scalar_select %p124, %s125, %s126
    %p130 = pneg %p124
    %p131 = scmp.eq.s32.totalorder %s10, 1
    %p132 = por %p130, %p131
    %p133 = scmp.ne.s32.totalorder %s125, %s128
    %p134 = scmp.eq.s32.totalorder %s10, 0
    %p135 = por %p133, %p134
    %p136 = scmp.ne.s32.totalorder %s125, %s128
    %p137 = scmp.eq.s32.totalorder %s15, 1
    %p138 = por %p136, %p137
    %p139 = scmp.ne.s32.totalorder %s128, %s129
    %p140 = scmp.eq.s32.totalorder %s15, 0
    %p141 = por %p139, %p140
    %p142 = scmp.ne.s32.totalorder %s128, %s129
    %p143 = scmp.eq.s32.totalorder %s16, 1
    %p144 = por %p142, %p143
    %p146 = scmp.ne.s32.totalorder %s129, %s145
    %p147 = scmp.eq.s32.totalorder %s16, 0
    %p148 = por %p146, %p147
    %p149 = scmp.le.s32.totalorder 1, %s10
    %p150 = scmp.lt.s32.totalorder %s10, 3
    %p151 = pnand %p149, %p150
    %p152 = pneg %p151
    // Predicated region
    $region9: #{orepa_forward.3} parent=5 // pred_check
      _
    $region10: #{orepa_forward.3} parent=5 // pred_check_branch
      %154 = sbr.rel (%p151) target = $region12
    $region11: #{orepa_forward.3} parent=5 // pred_region
      %s155 = ssub.s32 %s10, 1
      // Predicated region
      $region13: #{orepa_forward.3} parent=11 // pred_check
        %p156 = pneg %p71
      $region14: #{orepa_forward.3} parent=11 // pred_check_branch
        %158 = sbr.rel (%p156) target = $region16
      $region15: #{orepa_forward.3} parent=11 // pred_region
        _
      $region16: #{orepa_forward.3} parent=11 // pred_fallthru
        _
      // Predicated region
      $region17: #{orepa_forward.3} parent=11 // pred_check
        %p159 = pneg %p92
      $region18: #{orepa_forward.3} parent=11 // pred_check_branch
        %161 = sbr.rel (%p159) target = $region20
      $region19: #{orepa_forward.3} parent=11 // pred_region
        _
      $region20: #{orepa_forward.3} parent=11 // pred_fallthru
        _
      // Predicated region
      $region21: #{orepa_forward.3} parent=11 // pred_check
        %p162 = pneg %p113
      $region22: #{orepa_forward.3} parent=11 // pred_check_branch
        %164 = sbr.rel (%p162) target = $region24
      $region23: #{orepa_forward.3} parent=11 // pred_region
        _
      $region24: #{orepa_forward.3} parent=11 // pred_fallthru
        _
    $region12: #{orepa_forward.3} parent=5 // pred_fallthru
      _
    %p165 = scmp.lt.s32.totalorder %s10, 2
    // Predicated region
    $region25: #{orepa_forward.3} parent=5 // pred_check
      %p166 = pneg %p165
    $region26: #{orepa_forward.3} parent=5 // pred_check_branch
      %168 = sbr.rel (%p166) target = $region28
    $region27: #{orepa_forward.3} parent=5 // pred_region
      // Predicated region
      $region29: #{orepa_forward.3} parent=27 // pred_check
        %p169 = pneg %p44
      $region30: #{orepa_forward.3} parent=27 // pred_check_branch
        %171 = sbr.rel (%p169) target = $region32
      $region31: #{orepa_forward.3} parent=27 // pred_region
        %s172 = smul.u32 32, %s18
        %p173 = scmp.lt.s32.totalorder %s17, 1
        %s174 = scalar_select %p173, %s17, 1
        %p175 = scmp.lt.s32.totalorder %s172, 31
        %s176 = scalar_select %p175, %s172, 31
        %s177 = smul.addr %s174, 32
        %s178 = sadd.s32 %s176, %s177
        %s179 = smul.addr %s178, 4
        %s180 = scalar_lea.vmem %s0, %s179
        %s181 = smul.u32 32, %s18
      $region32: #{orepa_forward.3} parent=27 // pred_fallthru
        _
    $region28: #{orepa_forward.3} parent=5 // pred_fallthru
      _
    %p182 = scmp.le.s32.totalorder 1, %s10
    %p183 = scmp.lt.s32.totalorder %s10, 3
    %p184 = pnand %p182, %p183
    %p185 = pneg %p184
    // Predicated region
    $region33: #{orepa_forward.3} parent=5 // pred_check
      _
    $region34: #{orepa_forward.3} parent=5 // pred_check_branch
      %187 = sbr.rel (%p184) target = $region36
    $region35: #{orepa_forward.3} parent=5 // pred_region
      %s188 = ssub.s32 %s10, 1
      %s189 = smul.u32 32, %s20
      %p190 = scmp.lt.s32.totalorder %s19, 1
      %s191 = scalar_select %p190, %s19, 1
      %p192 = scmp.lt.s32.totalorder %s189, 31
      %s193 = scalar_select %p192, %s189, 31
      %s194 = smul.addr %s191, 32
      %s195 = sadd.s32 %s193, %s194
      %s196 = smul.addr %s195, 4
      %s197 = scalar_lea.vmem %s0, %s196
      %p198 = pneg %p50
      %p199 = pneg %p47
      %p200 = pneg %p71
      %p201 = pneg %p68
      %p202 = pneg %p92
      %p203 = pneg %p89
      %p204 = pneg %p113
      %p205 = pneg %p110
      %p206 = pneg %p141
      %p207 = pneg %p138
      %s208 = smul.u32 2, %s20
      %p209 = scmp.lt.s32.totalorder %s19, 1
      %s210 = scalar_select %p209, %s19, 1
      %p211 = scmp.lt.s32.totalorder %s208, 1
      %s212 = scalar_select %p211, %s208, 1
      %s213 = smul.addr %s210, 2
      %s214 = sadd.s32 %s212, %s213
      %s215 = smul.addr %s214, 8
      %s216 = scalar_lea.vmem %s4, %s215
      %s217 = smul.u32 32, %s20
      %p218 = scmp.lt.s32.totalorder %s19, 1
      %s219 = scalar_select %p218, %s19, 1
      %p220 = scmp.lt.s32.totalorder %s217, 31
      %s221 = scalar_select %p220, %s217, 31
      %s222 = smul.addr %s219, 32
      %s223 = sadd.s32 %s221, %s222
      %s224 = smul.addr %s223, 4
      %s225 = scalar_lea.vmem %s0, %s224
      %s226 = smul.u32 32, %s20
      %s227 = smul.u32 2, %s20
      %p228 = scmp.lt.s32.totalorder %s19, 1
      %s229 = scalar_select %p228, %s19, 1
      %p230 = scmp.lt.s32.totalorder %s227, 1
      %s231 = scalar_select %p230, %s227, 1
      %s232 = smul.addr %s229, 2
      %s233 = sadd.s32 %s231, %s232
      %s234 = smul.addr %s233, 8
      %s235 = scalar_lea.vmem %s4, %s234
      %s236 = smul.u32 2, %s20
      %v238 = vld [vmem:[%s225] sm:$0xf]
      %v239 = vld [vmem:[%s225 + $0x4] sm:$0xf]
      %v240 = vld [vmem:[%s225 + $0x8] sm:$0xf]
      %v241 = vld [vmem:[%s225 + $0xc] sm:$0xf]
      %v242 = vld [vmem:[%s225 + $0x10] sm:$0xf]
      %v243 = vld [vmem:[%s225 + $0x14] sm:$0xf]
      %v244 = vld [vmem:[%s225 + $0x18] sm:$0xf]
      %v245 = vld [vmem:[%s225 + $0x1c] sm:$0xf]
      %v246 = vld [vmem:[%s225 + $0x20] sm:$0xf]
      %v247 = vld [vmem:[%s225 + $0x24] sm:$0xf]
      %v248 = vld [vmem:[%s225 + $0x28] sm:$0xf]
      %v249 = vld [vmem:[%s225 + $0x2c] sm:$0xf]
      %v250 = vld [vmem:[%s225 + $0x30] sm:$0xf]
      %v251 = vld [vmem:[%s225 + $0x34] sm:$0xf]
      %v252 = vld [vmem:[%s225 + $0x38] sm:$0xf]
      %v253 = vld [vmem:[%s225 + $0x3c] sm:$0xf]
      %v254 = vld [vmem:[%s225 + $0x40] sm:$0xf]
      %v255 = vld [vmem:[%s225 + $0x44] sm:$0xf]
      %v256 = vld [vmem:[%s225 + $0x48] sm:$0xf]
      %v257 = vld [vmem:[%s225 + $0x4c] sm:$0xf]
      %v258 = vld [vmem:[%s225 + $0x50] sm:$0xf]
      %v259 = vld [vmem:[%s225 + $0x54] sm:$0xf]
      %v260 = vld [vmem:[%s225 + $0x58] sm:$0xf]
      %v261 = vld [vmem:[%s225 + $0x5c] sm:$0xf]
      %v262 = vld [vmem:[%s225 + $0x60] sm:$0xf]
      %v263 = vld [vmem:[%s225 + $0x64] sm:$0xf]
      %v264 = vld [vmem:[%s225 + $0x68] sm:$0xf]
      %v265 = vld [vmem:[%s225 + $0x6c] sm:$0xf]
      %v266 = vld [vmem:[%s225 + $0x70] sm:$0xf]
      %v267 = vld [vmem:[%s225 + $0x74] sm:$0xf]
      %v268 = vld [vmem:[%s225 + $0x78] sm:$0xf]
      %v269 = vld [vmem:[%s225 + $0x7c] sm:$0xf]
      %v270 = vld [vmem:[%s1] sm:$0xf]
      %v271 = vld [vmem:[%s1 + $0x4] sm:$0xf]
      %v272 = vld [vmem:[%s1 + $0x8] sm:$0xf]
      %v273 = vld [vmem:[%s1 + $0xc] sm:$0xf]
      %v274 = vld [vmem:[%s1 + $0x10] sm:$0xf]
      %v275 = vld [vmem:[%s1 + $0x14] sm:$0xf]
      %v276 = vld [vmem:[%s1 + $0x18] sm:$0xf]
      %v277 = vld [vmem:[%s1 + $0x1c] sm:$0xf]
      %v278 = vld [vmem:[%s1 + $0x20] sm:$0xf]
      %v279 = vld [vmem:[%s1 + $0x24] sm:$0xf]
      %v280 = vld [vmem:[%s1 + $0x28] sm:$0xf]
      %v281 = vld [vmem:[%s1 + $0x2c] sm:$0xf]
      %v282 = vld [vmem:[%s1 + $0x30] sm:$0xf]
      %v283 = vld [vmem:[%s1 + $0x34] sm:$0xf]
      %v284 = vld [vmem:[%s1 + $0x38] sm:$0xf]
      %v285 = vld [vmem:[%s1 + $0x3c] sm:$0xf]
      %v318 = vunpack.c.l.b16 %v238
      %v319 = vunpack.c.l.b16 %v239
      %v320 = vunpack.c.l.b16 %v240
      %v321 = vunpack.c.l.b16 %v241
      %v322 = vunpack.c.l.b16 %v242
      %v323 = vunpack.c.l.b16 %v243
      %v324 = vunpack.c.l.b16 %v244
      %v325 = vunpack.c.l.b16 %v245
      %v326 = vunpack.c.l.b16 %v246
      %v327 = vunpack.c.l.b16 %v247
      %v328 = vunpack.c.l.b16 %v248
      %v329 = vunpack.c.l.b16 %v249
      %v330 = vunpack.c.l.b16 %v250
      %v331 = vunpack.c.l.b16 %v251
      %v332 = vunpack.c.l.b16 %v252
      %v333 = vunpack.c.l.b16 %v253
      %v334 = vunpack.c.l.b16 %v254
      %v335 = vunpack.c.l.b16 %v255
      %v336 = vunpack.c.l.b16 %v256
      %v337 = vunpack.c.l.b16 %v257
      %v338 = vunpack.c.l.b16 %v258
      %v339 = vunpack.c.l.b16 %v259
      %v340 = vunpack.c.l.b16 %v260
      %v341 = vunpack.c.l.b16 %v261
      %v342 = vunpack.c.l.b16 %v262
      %v343 = vunpack.c.l.b16 %v263
      %v344 = vunpack.c.l.b16 %v264
      %v345 = vunpack.c.l.b16 %v265
      %v346 = vunpack.c.l.b16 %v266
      %v347 = vunpack.c.l.b16 %v267
      %v348 = vunpack.c.l.b16 %v268
      %v349 = vunpack.c.l.b16 %v269
      %v350 = vpack.c.b16 %v319, %v318
      %v351 = vpack.c.b16 %v321, %v320
      %v352 = vpack.c.b16 %v323, %v322
      %v353 = vpack.c.b16 %v325, %v324
      %v354 = vpack.c.b16 %v327, %v326
      %v355 = vpack.c.b16 %v329, %v328
      %v356 = vpack.c.b16 %v331, %v330
      %v357 = vpack.c.b16 %v333, %v332
      %v358 = vpack.c.b16 %v335, %v334
      %v359 = vpack.c.b16 %v337, %v336
      %v360 = vpack.c.b16 %v339, %v338
      %v361 = vpack.c.b16 %v341, %v340
      %v362 = vpack.c.b16 %v343, %v342
      %v363 = vpack.c.b16 %v345, %v344
      %v364 = vpack.c.b16 %v347, %v346
      %v365 = vpack.c.b16 %v349, %v348
      %v398 = vunpack.c.l.b16 %v270
      %v399 = vunpack.c.l.b16 %v271
      %v400 = vunpack.c.l.b16 %v272
      %v401 = vunpack.c.l.b16 %v273
      %v402 = vunpack.c.l.b16 %v274
      %v403 = vunpack.c.l.b16 %v275
      %v404 = vunpack.c.l.b16 %v276
      %v405 = vunpack.c.l.b16 %v277
      %v406 = vunpack.c.l.b16 %v278
      %v407 = vunpack.c.l.b16 %v279
      %v408 = vunpack.c.l.b16 %v280
      %v409 = vunpack.c.l.b16 %v281
      %v410 = vunpack.c.l.b16 %v282
      %v411 = vunpack.c.l.b16 %v283
      %v412 = vunpack.c.l.b16 %v284
      %v413 = vunpack.c.l.b16 %v285
      %v414 = vpack.c.b16 %v399, %v398
      %v415 = vpack.c.b16 %v401, %v400
      %v416 = vpack.c.b16 %v403, %v402
      %v417 = vpack.c.b16 %v405, %v404
      %v418 = vpack.c.b16 %v407, %v406
      %v419 = vpack.c.b16 %v409, %v408
      %v420 = vpack.c.b16 %v411, %v410
      %v421 = vpack.c.b16 %v413, %v412
      %430 = vmatprep.subr.bf16.mxu0 0
      %431 = vmatpush1.bf16.msra.mxu0 %v421
      %432 = vmatprep.subr.bf16.mxu0 0
      %433 = vmatpush1.bf16.msra.mxu0 %v420
      %434 = vmatprep.subr.bf16.mxu0 0
      %435 = vmatpush1.bf16.msra.mxu0 %v419
      %436 = vmatprep.subr.bf16.mxu0 0
      %437 = vmatpush1.bf16.msra.mxu0 %v418
      %438 = vmatprep.subr.bf16.mxu0 0
      %439 = vmatpush1.bf16.msra.mxu0 %v417
      %440 = vmatprep.subr.bf16.mxu0 0
      %441 = vmatpush1.bf16.msra.mxu0 %v416
      %442 = vmatprep.subr.bf16.mxu0 0
      %443 = vmatpush1.bf16.msra.mxu0 %v415
      %444 = vmatprep.subr.bf16.mxu0 0
      %445 = vmatpush1.bf16.msra.mxu0 %v414
      %446 = vmatprep.subr.bf16.mxu0 0
      %447 = vmatpush2.bf16.msra.mxu0 0
      %448 = vmatprep.subr.bf16.mxu0 0
      %449 = vmatpush2.bf16.msra.mxu0 0
      %450 = vmatprep.subr.bf16.mxu0 0
      %451 = vmatpush2.bf16.msra.mxu0 0
      %452 = vmatprep.subr.bf16.mxu0 0
      %453 = vmatpush2.bf16.msra.mxu0 0
      %454 = vmatprep.subr.bf16.mxu0 0
      %455 = vmatpush2.bf16.msra.mxu0 0
      %456 = vmatprep.subr.bf16.mxu0 0
      %457 = vmatpush2.bf16.msra.mxu0 0
      %458 = vmatprep.subr.bf16.mxu0 0
      %459 = vmatpush2.bf16.msra.mxu0 0
      %460 = vmatprep.subr.bf16.mxu0 0
      %461 = vmatpush2.bf16.msra.mxu0 0
      %462 = vmatprep.mubr.bf16.mxu0 0
      %463 = vmatmul.mubr.bf16.gmra.mxu0 %v350
      %v464 = vpop.f32.mrf.mxu0
      %v465 = vadd.f32 0.0, %v464
      %v466 = vpop.f32.mrf.mxu0
      %v467 = vpop.f32.mrf.mxu0
      %v468 = vadd.f32 0.0, %v467
      %v469 = vpop.f32.mrf.mxu0
      %470 = vmatprep.mubr.bf16.mxu0 0
      %471 = vmatmul.mubr.bf16.gmra.mxu0 %v351
      %v472 = vpop.f32.mrf.mxu0
      %v473 = vadd.f32 0.0, %v472
      %v474 = vpop.f32.mrf.mxu0
      %v475 = vpop.f32.mrf.mxu0
      %v476 = vadd.f32 0.0, %v475
      %v477 = vpop.f32.mrf.mxu0
      %478 = vmatprep.mubr.bf16.mxu0 0
      %479 = vmatmul.mubr.bf16.gmra.mxu0 %v352
      %v480 = vpop.f32.mrf.mxu0
      %v481 = vadd.f32 0.0, %v480
      %v482 = vpop.f32.mrf.mxu0
      %v483 = vpop.f32.mrf.mxu0
      %v484 = vadd.f32 0.0, %v483
      %v485 = vpop.f32.mrf.mxu0
      %486 = vmatprep.mubr.bf16.mxu0 0
      %487 = vmatmul.mubr.bf16.gmra.mxu0 %v353
      %v488 = vpop.f32.mrf.mxu0
      %v489 = vadd.f32 0.0, %v488
      %v490 = vpop.f32.mrf.mxu0
      %v491 = vpop.f32.mrf.mxu0
      %v492 = vadd.f32 0.0, %v491
      %v493 = vpop.f32.mrf.mxu0
      %494 = vmatprep.mubr.bf16.mxu0 0
      %495 = vmatmul.mubr.bf16.gmra.mxu0 %v354
      %v496 = vpop.f32.mrf.mxu0
      %v497 = vadd.f32 0.0, %v496
      %v498 = vpop.f32.mrf.mxu0
      %v499 = vpop.f32.mrf.mxu0
      %v500 = vadd.f32 0.0, %v499
      %v501 = vpop.f32.mrf.mxu0
      %502 = vmatprep.mubr.bf16.mxu0 0
      %503 = vmatmul.mubr.bf16.gmra.mxu0 %v355
      %v504 = vpop.f32.mrf.mxu0
      %v505 = vadd.f32 0.0, %v504
      %v506 = vpop.f32.mrf.mxu0
      %v507 = vpop.f32.mrf.mxu0
      %v508 = vadd.f32 0.0, %v507
      %v509 = vpop.f32.mrf.mxu0
      %510 = vmatprep.mubr.bf16.mxu0 0
      %511 = vmatmul.mubr.bf16.gmra.mxu0 %v356
      %v512 = vpop.f32.mrf.mxu0
      %v513 = vadd.f32 0.0, %v512
      %v514 = vpop.f32.mrf.mxu0
      %v515 = vpop.f32.mrf.mxu0
      %v516 = vadd.f32 0.0, %v515
      %v517 = vpop.f32.mrf.mxu0
      %518 = vmatprep.mubr.bf16.mxu0 0
      %519 = vmatmul.mubr.bf16.gmra.mxu0 %v357
      %v520 = vpop.f32.mrf.mxu0
      %v521 = vadd.f32 0.0, %v520
      %v522 = vpop.f32.mrf.mxu0
      %v523 = vpop.f32.mrf.mxu0
      %v524 = vadd.f32 0.0, %v523
      %v525 = vpop.f32.mrf.mxu0
      %526 = vmatprep.mubr.bf16.mxu0 0
      %527 = vmatmul.mubr.bf16.gmra.mxu0 %v358
      %v528 = vpop.f32.mrf.mxu0
      %v529 = vadd.f32 0.0, %v528
      %v530 = vpop.f32.mrf.mxu0
      %v531 = vpop.f32.mrf.mxu0
      %v532 = vadd.f32 0.0, %v531
      %v533 = vpop.f32.mrf.mxu0
      %534 = vmatprep.mubr.bf16.mxu0 0
      %535 = vmatmul.mubr.bf16.gmra.mxu0 %v359
      %v536 = vpop.f32.mrf.mxu0
      %v537 = vadd.f32 0.0, %v536
      %v538 = vpop.f32.mrf.mxu0
      %v539 = vpop.f32.mrf.mxu0
      %v540 = vadd.f32 0.0, %v539
      %v541 = vpop.f32.mrf.mxu0
      %542 = vmatprep.mubr.bf16.mxu0 0
      %543 = vmatmul.mubr.bf16.gmra.mxu0 %v360
      %v544 = vpop.f32.mrf.mxu0
      %v545 = vadd.f32 0.0, %v544
      %v546 = vpop.f32.mrf.mxu0
      %v547 = vpop.f32.mrf.mxu0
      %v548 = vadd.f32 0.0, %v547
      %v549 = vpop.f32.mrf.mxu0
      %550 = vmatprep.mubr.bf16.mxu0 0
      %551 = vmatmul.mubr.bf16.gmra.mxu0 %v361
      %v552 = vpop.f32.mrf.mxu0
      %v553 = vadd.f32 0.0, %v552
      %v554 = vpop.f32.mrf.mxu0
      %v555 = vpop.f32.mrf.mxu0
      %v556 = vadd.f32 0.0, %v555
      %v557 = vpop.f32.mrf.mxu0
      %558 = vmatprep.mubr.bf16.mxu0 0
      %559 = vmatmul.mubr.bf16.gmra.mxu0 %v362
      %v560 = vpop.f32.mrf.mxu0
      %v561 = vadd.f32 0.0, %v560
      %v562 = vpop.f32.mrf.mxu0
      %v563 = vpop.f32.mrf.mxu0
      %v564 = vadd.f32 0.0, %v563
      %v565 = vpop.f32.mrf.mxu0
      %566 = vmatprep.mubr.bf16.mxu0 0
      %567 = vmatmul.mubr.bf16.gmra.mxu0 %v363
      %v568 = vpop.f32.mrf.mxu0
      %v569 = vadd.f32 0.0, %v568
      %v570 = vpop.f32.mrf.mxu0
      %v571 = vpop.f32.mrf.mxu0
      %v572 = vadd.f32 0.0, %v571
      %v573 = vpop.f32.mrf.mxu0
      %574 = vmatprep.mubr.bf16.mxu0 0
      %575 = vmatmul.mubr.bf16.gmra.mxu0 %v364
      %v576 = vpop.f32.mrf.mxu0
      %v577 = vadd.f32 0.0, %v576
      %v578 = vpop.f32.mrf.mxu0
      %v579 = vpop.f32.mrf.mxu0
      %v580 = vadd.f32 0.0, %v579
      %v581 = vpop.f32.mrf.mxu0
      %582 = vmatprep.mubr.bf16.mxu0 0
      %583 = vmatmul.mubr.bf16.gmra.mxu0 %v365
      %v584 = vpop.f32.mrf.mxu0
      %v585 = vadd.f32 0.0, %v584
      %v586 = vpop.f32.mrf.mxu0
      %v587 = vpop.f32.mrf.mxu0
      %v588 = vadd.f32 0.0, %v587
      %v589 = vpop.f32.mrf.mxu0
      %590 = vdwg.mxu0
      %v591 = vld [vmem:[%s2] sm:$0x1]
      %v593 = vlaneseq
      %v594 = vshrl.u32 %v593, 7
      %v595 = vsub.s32 0, %v594
      %v596 = vrot.slane %v591, %v595
      %v598 = vmul.f32 %v465, %v596
      %v599 = vmul.f32 %v468, %v596
      %v600 = vmul.f32 %v473, %v596
      %v601 = vmul.f32 %v476, %v596
      %v602 = vmul.f32 %v481, %v596
      %v603 = vmul.f32 %v484, %v596
      %v604 = vmul.f32 %v489, %v596
      %v605 = vmul.f32 %v492, %v596
      %v606 = vmul.f32 %v497, %v596
      %v607 = vmul.f32 %v500, %v596
      %v608 = vmul.f32 %v505, %v596
      %v609 = vmul.f32 %v508, %v596
      %v610 = vmul.f32 %v513, %v596
      %v611 = vmul.f32 %v516, %v596
      %v612 = vmul.f32 %v521, %v596
      %v613 = vmul.f32 %v524, %v596
      %v614 = vmul.f32 %v529, %v596
      %v615 = vmul.f32 %v532, %v596
      %v616 = vmul.f32 %v537, %v596
      %v617 = vmul.f32 %v540, %v596
      %v618 = vmul.f32 %v545, %v596
      %v619 = vmul.f32 %v548, %v596
      %v620 = vmul.f32 %v553, %v596
      %v621 = vmul.f32 %v556, %v596
      %v622 = vmul.f32 %v561, %v596
      %v623 = vmul.f32 %v564, %v596
      %v624 = vmul.f32 %v569, %v596
      %v625 = vmul.f32 %v572, %v596
      %v626 = vmul.f32 %v577, %v596
      %v627 = vmul.f32 %v580, %v596
      %v628 = vmul.f32 %v585, %v596
      %v629 = vmul.f32 %v588, %v596
      %v630 = vld [vmem:[%s3] sm:$0x1]
      %v632 = vlaneseq
      %v633 = vshrl.u32 %v632, 7
      %v634 = vsub.s32 0, %v633
      %v635 = vrot.slane %v630, %v634
      %v637 = vadd.f32 %v598, %v635
      %v638 = vadd.f32 %v599, %v635
      %v639 = vadd.f32 %v600, %v635
      %v640 = vadd.f32 %v601, %v635
      %v641 = vadd.f32 %v602, %v635
      %v642 = vadd.f32 %v603, %v635
      %v643 = vadd.f32 %v604, %v635
      %v644 = vadd.f32 %v605, %v635
      %v645 = vadd.f32 %v606, %v635
      %v646 = vadd.f32 %v607, %v635
      %v647 = vadd.f32 %v608, %v635
      %v648 = vadd.f32 %v609, %v635
      %v649 = vadd.f32 %v610, %v635
      %v650 = vadd.f32 %v611, %v635
      %v651 = vadd.f32 %v612, %v635
      %v652 = vadd.f32 %v613, %v635
      %v653 = vadd.f32 %v614, %v635
      %v654 = vadd.f32 %v615, %v635
      %v655 = vadd.f32 %v616, %v635
      %v656 = vadd.f32 %v617, %v635
      %v657 = vadd.f32 %v618, %v635
      %v658 = vadd.f32 %v619, %v635
      %v659 = vadd.f32 %v620, %v635
      %v660 = vadd.f32 %v621, %v635
      %v661 = vadd.f32 %v622, %v635
      %v662 = vadd.f32 %v623, %v635
      %v663 = vadd.f32 %v624, %v635
      %v664 = vadd.f32 %v625, %v635
      %v665 = vadd.f32 %v626, %v635
      %v666 = vadd.f32 %v627, %v635
      %v667 = vadd.f32 %v628, %v635
      %v668 = vadd.f32 %v629, %v635
      %v669 = vxor.u32 %v637, 2147483648
      %v670 = vxor.u32 %v638, 2147483648
      %v671 = vxor.u32 %v639, 2147483648
      %v672 = vxor.u32 %v640, 2147483648
      %v673 = vxor.u32 %v641, 2147483648
      %v674 = vxor.u32 %v642, 2147483648
      %v675 = vxor.u32 %v643, 2147483648
      %v676 = vxor.u32 %v644, 2147483648
      %v677 = vxor.u32 %v645, 2147483648
      %v678 = vxor.u32 %v646, 2147483648
      %v679 = vxor.u32 %v647, 2147483648
      %v680 = vxor.u32 %v648, 2147483648
      %v681 = vxor.u32 %v649, 2147483648
      %v682 = vxor.u32 %v650, 2147483648
      %v683 = vxor.u32 %v651, 2147483648
      %v684 = vxor.u32 %v652, 2147483648
      %v685 = vxor.u32 %v653, 2147483648
      %v686 = vxor.u32 %v654, 2147483648
      %v687 = vxor.u32 %v655, 2147483648
      %v688 = vxor.u32 %v656, 2147483648
      %v689 = vxor.u32 %v657, 2147483648
      %v690 = vxor.u32 %v658, 2147483648
      %v691 = vxor.u32 %v659, 2147483648
      %v692 = vxor.u32 %v660, 2147483648
      %v693 = vxor.u32 %v661, 2147483648
      %v694 = vxor.u32 %v662, 2147483648
      %v695 = vxor.u32 %v663, 2147483648
      %v696 = vxor.u32 %v664, 2147483648
      %v697 = vxor.u32 %v665, 2147483648
      %v698 = vxor.u32 %v666, 2147483648
      %v699 = vxor.u32 %v667, 2147483648
      %v700 = vxor.u32 %v668, 2147483648
      %v701 = vmul.f32 %v669, 1.442695
      %v702 = vpow.pop %v701
      %v703 = vmul.f32 %v670, 1.442695
      %v704 = vpow.pop %v703
      %v705 = vmul.f32 %v671, 1.442695
      %v706 = vpow.pop %v705
      %v707 = vmul.f32 %v672, 1.442695
      %v708 = vpow.pop %v707
      %v709 = vmul.f32 %v673, 1.442695
      %v710 = vpow.pop %v709
      %v711 = vmul.f32 %v674, 1.442695
      %v712 = vpow.pop %v711
      %v713 = vmul.f32 %v675, 1.442695
      %v714 = vpow.pop %v713
      %v715 = vmul.f32 %v676, 1.442695
      %v716 = vpow.pop %v715
      %v717 = vmul.f32 %v677, 1.442695
      %v718 = vpow.pop %v717
      %v719 = vmul.f32 %v678, 1.442695
      %v720 = vpow.pop %v719
      %v721 = vmul.f32 %v679, 1.442695
      %v722 = vpow.pop %v721
      %v723 = vmul.f32 %v680, 1.442695
      %v724 = vpow.pop %v723
      %v725 = vmul.f32 %v681, 1.442695
      %v726 = vpow.pop %v725
      %v727 = vmul.f32 %v682, 1.442695
      %v728 = vpow.pop %v727
      %v729 = vmul.f32 %v683, 1.442695
      %v730 = vpow.pop %v729
      %v731 = vmul.f32 %v684, 1.442695
      %v732 = vpow.pop %v731
      %v733 = vmul.f32 %v685, 1.442695
      %v734 = vpow.pop %v733
      %v735 = vmul.f32 %v686, 1.442695
      %v736 = vpow.pop %v735
      %v737 = vmul.f32 %v687, 1.442695
      %v738 = vpow.pop %v737
      %v739 = vmul.f32 %v688, 1.442695
      %v740 = vpow.pop %v739
      %v741 = vmul.f32 %v689, 1.442695
      %v742 = vpow.pop %v741
      %v743 = vmul.f32 %v690, 1.442695
      %v744 = vpow.pop %v743
      %v745 = vmul.f32 %v691, 1.442695
      %v746 = vpow.pop %v745
      %v747 = vmul.f32 %v692, 1.442695
      %v748 = vpow.pop %v747
      %v749 = vmul.f32 %v693, 1.442695
      %v750 = vpow.pop %v749
      %v751 = vmul.f32 %v694, 1.442695
      %v752 = vpow.pop %v751
      %v753 = vmul.f32 %v695, 1.442695
      %v754 = vpow.pop %v753
      %v755 = vmul.f32 %v696, 1.442695
      %v756 = vpow.pop %v755
      %v757 = vmul.f32 %v697, 1.442695
      %v758 = vpow.pop %v757
      %v759 = vmul.f32 %v698, 1.442695
      %v760 = vpow.pop %v759
      %v761 = vmul.f32 %v699, 1.442695
      %v762 = vpow.pop %v761
      %v763 = vmul.f32 %v700, 1.442695
      %v764 = vpow.pop %v763
      %v765 = vadd.f32 %v702, 1.0
      %v766 = vadd.f32 %v704, 1.0
      %v767 = vadd.f32 %v706, 1.0
      %v768 = vadd.f32 %v708, 1.0
      %v769 = vadd.f32 %v710, 1.0
      %v770 = vadd.f32 %v712, 1.0
      %v771 = vadd.f32 %v714, 1.0
      %v772 = vadd.f32 %v716, 1.0
      %v773 = vadd.f32 %v718, 1.0
      %v774 = vadd.f32 %v720, 1.0
      %v775 = vadd.f32 %v722, 1.0
      %v776 = vadd.f32 %v724, 1.0
      %v777 = vadd.f32 %v726, 1.0
      %v778 = vadd.f32 %v728, 1.0
      %v779 = vadd.f32 %v730, 1.0
      %v780 = vadd.f32 %v732, 1.0
      %v781 = vadd.f32 %v734, 1.0
      %v782 = vadd.f32 %v736, 1.0
      %v783 = vadd.f32 %v738, 1.0
      %v784 = vadd.f32 %v740, 1.0
      %v785 = vadd.f32 %v742, 1.0
      %v786 = vadd.f32 %v744, 1.0
      %v787 = vadd.f32 %v746, 1.0
      %v788 = vadd.f32 %v748, 1.0
      %v789 = vadd.f32 %v750, 1.0
      %v790 = vadd.f32 %v752, 1.0
      %v791 = vadd.f32 %v754, 1.0
      %v792 = vadd.f32 %v756, 1.0
      %v793 = vadd.f32 %v758, 1.0
      %v794 = vadd.f32 %v760, 1.0
      %v795 = vadd.f32 %v762, 1.0
      %v796 = vadd.f32 %v764, 1.0
      %v797 = vrcp.pop %v765
      %v798 = vmul.f32 1.0, %v797
      %v799 = vrcp.pop %v766
      %v800 = vmul.f32 1.0, %v799
      %v801 = vrcp.pop %v767
      %v802 = vmul.f32 1.0, %v801
      %v803 = vrcp.pop %v768
      %v804 = vmul.f32 1.0, %v803
      %v805 = vrcp.pop %v769
      %v806 = vmul.f32 1.0, %v805
      %v807 = vrcp.pop %v770
      %v808 = vmul.f32 1.0, %v807
      %v809 = vrcp.pop %v771
      %v810 = vmul.f32 1.0, %v809
      %v811 = vrcp.pop %v772
      %v812 = vmul.f32 1.0, %v811
      %v813 = vrcp.pop %v773
      %v814 = vmul.f32 1.0, %v813
      %v815 = vrcp.pop %v774
      %v816 = vmul.f32 1.0, %v815
      %v817 = vrcp.pop %v775
      %v818 = vmul.f32 1.0, %v817
      %v819 = vrcp.pop %v776
      %v820 = vmul.f32 1.0, %v819
      %v821 = vrcp.pop %v777
      %v822 = vmul.f32 1.0, %v821
      %v823 = vrcp.pop %v778
      %v824 = vmul.f32 1.0, %v823
      %v825 = vrcp.pop %v779
      %v826 = vmul.f32 1.0, %v825
      %v827 = vrcp.pop %v780
      %v828 = vmul.f32 1.0, %v827
      %v829 = vrcp.pop %v781
      %v830 = vmul.f32 1.0, %v829
      %v831 = vrcp.pop %v782
      %v832 = vmul.f32 1.0, %v831
      %v833 = vrcp.pop %v783
      %v834 = vmul.f32 1.0, %v833
      %v835 = vrcp.pop %v784
      %v836 = vmul.f32 1.0, %v835
      %v837 = vrcp.pop %v785
      %v838 = vmul.f32 1.0, %v837
      %v839 = vrcp.pop %v786
      %v840 = vmul.f32 1.0, %v839
      %v841 = vrcp.pop %v787
      %v842 = vmul.f32 1.0, %v841
      %v843 = vrcp.pop %v788
      %v844 = vmul.f32 1.0, %v843
      %v845 = vrcp.pop %v789
      %v846 = vmul.f32 1.0, %v845
      %v847 = vrcp.pop %v790
      %v848 = vmul.f32 1.0, %v847
      %v849 = vrcp.pop %v791
      %v850 = vmul.f32 1.0, %v849
      %v851 = vrcp.pop %v792
      %v852 = vmul.f32 1.0, %v851
      %v853 = vrcp.pop %v793
      %v854 = vmul.f32 1.0, %v853
      %v855 = vrcp.pop %v794
      %v856 = vmul.f32 1.0, %v855
      %v857 = vrcp.pop %v795
      %v858 = vmul.f32 1.0, %v857
      %v859 = vrcp.pop %v796
      %v860 = vmul.f32 1.0, %v859
      %v861 = vmul.f32 %v637, %v798
      %v862 = vmul.f32 %v638, %v800
      %v863 = vmul.f32 %v639, %v802
      %v864 = vmul.f32 %v640, %v804
      %v865 = vmul.f32 %v641, %v806
      %v866 = vmul.f32 %v642, %v808
      %v867 = vmul.f32 %v643, %v810
      %v868 = vmul.f32 %v644, %v812
      %v869 = vmul.f32 %v645, %v814
      %v870 = vmul.f32 %v646, %v816
      %v871 = vmul.f32 %v647, %v818
      %v872 = vmul.f32 %v648, %v820
      %v873 = vmul.f32 %v649, %v822
      %v874 = vmul.f32 %v650, %v824
      %v875 = vmul.f32 %v651, %v826
      %v876 = vmul.f32 %v652, %v828
      %v877 = vmul.f32 %v653, %v830
      %v878 = vmul.f32 %v654, %v832
      %v879 = vmul.f32 %v655, %v834
      %v880 = vmul.f32 %v656, %v836
      %v881 = vmul.f32 %v657, %v838
      %v882 = vmul.f32 %v658, %v840
      %v883 = vmul.f32 %v659, %v842
      %v884 = vmul.f32 %v660, %v844
      %v885 = vmul.f32 %v661, %v846
      %v886 = vmul.f32 %v662, %v848
      %v887 = vmul.f32 %v663, %v850
      %v888 = vmul.f32 %v664, %v852
      %v889 = vmul.f32 %v665, %v854
      %v890 = vmul.f32 %v666, %v856
      %v891 = vmul.f32 %v667, %v858
      %v892 = vmul.f32 %v668, %v860
      %893 = vxpose.xlu0.b32.start [1/16] %v861, 128
      %894 = vxpose.xlu0.b32.cont [2/16] %v862, 128
      %895 = vxpose.xlu0.b32.cont [3/16] %v863, 128
      %896 = vxpose.xlu0.b32.cont [4/16] %v864, 128
      %897 = vxpose.xlu0.b32.cont [5/16] %v865, 128
      %898 = vxpose.xlu0.b32.cont [6/16] %v866, 128
      %899 = vxpose.xlu0.b32.cont [7/16] %v867, 128
      %900 = vxpose.xlu0.b32.cont [8/16] %v868, 128
      %901 = vxpose.xlu0.b32.cont [9/16] %v869, 128
      %902 = vxpose.xlu0.b32.cont [10/16] %v870, 128
      %903 = vxpose.xlu0.b32.cont [11/16] %v871, 128
      %904 = vxpose.xlu0.b32.cont [12/16] %v872, 128
      %905 = vxpose.xlu0.b32.cont [13/16] %v873, 128
      %906 = vxpose.xlu0.b32.cont [14/16] %v874, 128
      %907 = vxpose.xlu0.b32.cont [15/16] %v875, 128
      %908 = vxpose.xlu0.b32.end [16/16] %v876, 128
      %v909 = vpop.trf.xlu0
      %v910 = vpop.trf.xlu0
      %v911 = vpop.trf.xlu0
      %v912 = vpop.trf.xlu0
      %v913 = vpop.trf.xlu0
      %v914 = vpop.trf.xlu0
      %v915 = vpop.trf.xlu0
      %v916 = vpop.trf.xlu0
      %v917 = vpop.trf.xlu0
      %v918 = vpop.trf.xlu0
      %v919 = vpop.trf.xlu0
      %v920 = vpop.trf.xlu0
      %v921 = vpop.trf.xlu0
      %v922 = vpop.trf.xlu0
      %v923 = vpop.trf.xlu0
      %v924 = vpop.trf.xlu0
      %925 = vxpose.xlu0.b32.start [1/16] %v877, 128
      %926 = vxpose.xlu0.b32.cont [2/16] %v878, 128
      %927 = vxpose.xlu0.b32.cont [3/16] %v879, 128
      %928 = vxpose.xlu0.b32.cont [4/16] %v880, 128
      %929 = vxpose.xlu0.b32.cont [5/16] %v881, 128
      %930 = vxpose.xlu0.b32.cont [6/16] %v882, 128
      %931 = vxpose.xlu0.b32.cont [7/16] %v883, 128
      %932 = vxpose.xlu0.b32.cont [8/16] %v884, 128
      %933 = vxpose.xlu0.b32.cont [9/16] %v885, 128
      %934 = vxpose.xlu0.b32.cont [10/16] %v886, 128
      %935 = vxpose.xlu0.b32.cont [11/16] %v887, 128
      %936 = vxpose.xlu0.b32.cont [12/16] %v888, 128
      %937 = vxpose.xlu0.b32.cont [13/16] %v889, 128
      %938 = vxpose.xlu0.b32.cont [14/16] %v890, 128
      %939 = vxpose.xlu0.b32.cont [15/16] %v891, 128
      %940 = vxpose.xlu0.b32.end [16/16] %v892, 128
      %v941 = vpop.trf.xlu0
      %v942 = vpop.trf.xlu0
      %v943 = vpop.trf.xlu0
      %v944 = vpop.trf.xlu0
      %v945 = vpop.trf.xlu0
      %v946 = vpop.trf.xlu0
      %v947 = vpop.trf.xlu0
      %v948 = vpop.trf.xlu0
      %v949 = vpop.trf.xlu0
      %v950 = vpop.trf.xlu0
      %v951 = vpop.trf.xlu0
      %v952 = vpop.trf.xlu0
      %v953 = vpop.trf.xlu0
      %v954 = vpop.trf.xlu0
      %v955 = vpop.trf.xlu0
      %v956 = vpop.trf.xlu0
      %957 = vst [vmem:[%s235] sm:$0xff] %v909
      %958 = vst [vmem:[%s235 + $0x8] sm:$0xff] %v941
      %s959 = smul.u32 2, %s20
      %p960 = scmp.lt.s32.totalorder %s19, 1
      %s961 = scalar_select %p960, %s19, 1
      %p962 = scmp.lt.s32.totalorder %s959, 1
      %s963 = scalar_select %p962, %s959, 1
      %s964 = smul.addr %s961, 2
      %s965 = sadd.s32 %s963, %s964
      %s966 = smul.addr %s965, 8
      %s967 = scalar_lea.vmem %s4, %s966
      // Predicated region
      $region37: #{orepa_forward.3} parent=35 // pred_check
        %p968 = pneg %p138
      $region38: #{orepa_forward.3} parent=35 // pred_check_branch
        %970 = sbr.rel (%p968) target = $region40
      $region39: #{orepa_forward.3} parent=35 // pred_region
        %s971 = smul.u32 2, %s20
      $region40: #{orepa_forward.3} parent=35 // pred_fallthru
        _
    $region36: #{orepa_forward.3} parent=5 // pred_fallthru
      _
    %p972 = scmp.le.s32.totalorder 2, %s10
    // Predicated region
    $region41: #{orepa_forward.3} parent=5 // pred_check
      %p973 = pneg %p972
    $region42: #{orepa_forward.3} parent=5 // pred_check_branch
      %975 = sbr.rel (%p973) target = $region44
    $region43: #{orepa_forward.3} parent=5 // pred_region
      %s976 = ssub.s32 %s10, 2
      // Predicated region
      $region45: #{orepa_forward.3} parent=43 // pred_check
        %p977 = pneg %p144
      $region46: #{orepa_forward.3} parent=43 // pred_check_branch
        %979 = sbr.rel (%p977) target = $region48
      $region47: #{orepa_forward.3} parent=43 // pred_region
        %s980 = smul.u32 2, %s22
        %p981 = scmp.lt.s32.totalorder %s21, 1
        %s982 = scalar_select %p981, %s21, 1
        %p983 = scmp.lt.s32.totalorder %s980, 1
        %s984 = scalar_select %p983, %s980, 1
        %s985 = smul.addr %s982, 2
        %s986 = sadd.s32 %s984, %s985
        %s987 = smul.addr %s986, 8
        %s988 = scalar_lea.vmem %s4, %s987
      $region48: #{orepa_forward.3} parent=43 // pred_fallthru
        _
    $region44: #{orepa_forward.3} parent=5 // pred_fallthru
      _
  $region6: #{orepa_forward.3} parent=0 // loop_footer
    %s14 = sadd.s32 1, %s10
  $region7: #{orepa_forward.3} parent=0 // loop_footer_branch
    %9 = sbr.rel target = $region3
  $region8: #{orepa_forward.3} parent=0 // loop_exit
    _

</llo_original>
